<compile_context>
chip_gen: v6e
topology: v6e:2x2x1
jax: 0.10.0
libtpu: 0.0.40
codegen_flags: <defaults>
</compile_context>

<pallas_src>
import jax
import jax.numpy as jnp
from jax.experimental import pallas as pl
from jax.experimental.pallas import tpu as pltpu

LN_EPS = 1e-5
BN_EPS = 1e-5


# ------------------------------ Pallas kernels ------------------------------ #

def _head_math(combined, lng, lnb, fc1w, fc1b, wres, wfc2, b2r, outw, outb):
    """LayerNorm -> fc1(+BN1 folded)/relu -> (fc2(+BN2) + residual) as two accumulated dots -> relu -> logits."""
    mmdt = fc1w.dtype

    mu = jnp.mean(combined, axis=-1, keepdims=True)
    var = jnp.mean((combined - mu) ** 2, axis=-1, keepdims=True)
    cn = (combined - mu) * jax.lax.rsqrt(var + LN_EPS)
    cn = cn * lng + lnb

    h1 = jnp.dot(cn.astype(mmdt), fc1w, preferred_element_type=jnp.float32) + fc1b
    h1 = jnp.maximum(h1, 0.0)
    # TODO(synk): Dropout and BatchNorm batch-statistics are training-mode only; eval semantics
    # here (dropout = identity, BN folded into fc weights using running stats).

    # fc2(+BN2) and the residual Linear as two dots into one accumulator (no lane concat).
    h2 = (jnp.dot(cn.astype(mmdt), wres, preferred_element_type=jnp.float32)
          + jnp.dot(h1.astype(mmdt), wfc2, preferred_element_type=jnp.float32)
          + b2r)
    h2 = jnp.maximum(h2, 0.0)

    return jnp.dot(h2.astype(mmdt), outw, preferred_element_type=jnp.float32) + outb


def _fused_kernel(tok_ref, mask_ref, attw_ref, wc_ref, bc_ref,
                  lng_ref, lnb_ref, fc1w_ref, fc1b_ref,
                  wres_ref, wfc2_ref, b2r_ref, outw_ref, outb_ref,
                  out_ref, slab_ref):
    """Attention + tap-accumulated conv branches + max-pool + full classifier head."""
    x = tok_ref[...]                                         # (Bt, S, D)  f32
    Bt, S, D = x.shape
    mmdt = wc_ref.dtype
    twoH = bc_ref.shape[-1]

    # ---- AtencaoSeletiva: (Bt, S) lane-major masked softmax ----
    attw = attw_ref[...]                                     # (1, D)
    scores = jnp.sum(x * attw[None, :, :], axis=-1)          # (Bt, S)
    mask = mask_ref[...]                                     # (Bt, S)
    scores = jnp.where(mask == 0.0, jnp.float32(-1e9), scores)
    scores = scores - jnp.max(scores, axis=-1, keepdims=True)
    e = jnp.exp(scores)
    attn = e / jnp.sum(e, axis=-1, keepdims=True)            # (Bt, S)
    context = jnp.sum(x * attn[:, :, None], axis=1)          # (Bt, D)

    # ---- Conv1d(k=3,p=1) + Conv1d(k=5,p=2): tap-accumulated matmuls ----
    # Zero-padded slab in persistent VMEM scratch; only the 4 border rows get zeroed.
    slab_ref[:, 0:2, :] = jnp.zeros((Bt, 2, D), jnp.float32)
    slab_ref[:, S + 2:S + 4, :] = jnp.zeros((Bt, 2, D), jnp.float32)
    slab_ref[:, 2:S + 2, :] = x

    acc = jnp.zeros((Bt * S, twoH), jnp.float32)
    for k in range(5):                                       # static unroll: 5 MXU pushes, one accumulator
        xs = slab_ref[:, k:k + S, :].reshape(Bt * S, D)
        acc = acc + jnp.dot(xs.astype(mmdt), wc_ref[k],
                            preferred_element_type=jnp.float32)
    conv = jnp.maximum(acc + bc_ref[...], 0.0).reshape(Bt, S, twoH)
    pooled = jnp.max(conv, axis=1)                           # (Bt, 2H) adaptive max pool

    # combined = cat([context, conv1_pooled, conv2_pooled], dim=1)
    combined = jnp.concatenate([context, pooled], axis=-1)   # (Bt, C)

    out_ref[...] = _head_math(combined, lng_ref[...], lnb_ref[...],
                              fc1w_ref[...], fc1b_ref[...],
                              wres_ref[...], wfc2_ref[...], b2r_ref[...],
                              outw_ref[...], outb_ref[...])


def _head_kernel(comb_ref, lng_ref, lnb_ref, fc1w_ref, fc1b_ref,
                 wres_ref, wfc2_ref, b2r_ref, outw_ref, outb_ref, out_ref):
    """Head-only kernel for the `all_tokens is None` branch (combined = x)."""
    out_ref[...] = _head_math(comb_ref[...], lng_ref[...], lnb_ref[...],
                              fc1w_ref[...], fc1b_ref[...],
                              wres_ref[...], wfc2_ref[...], b2r_ref[...],
                              outw_ref[...], outb_ref[...])


# ---------------------------- parameter handling ----------------------------- #

def init_params(key, input_dim, hidden_dim, n_classes):
    """Deterministic params with the same shapes as the torch module."""
    H, H2 = hidden_dim, hidden_dim // 2
    C = input_dim + 2 * hidden_dim
    ks = jax.random.split(key, 8)

    def lin(k, out_d, in_d):
        kw, kb = jax.random.split(k)
        lim = 1.0 / jnp.sqrt(jnp.float32(in_d))
        return (jax.random.uniform(kw, (out_d, in_d), jnp.float32, -lim, lim),
                jax.random.uniform(kb, (out_d,), jnp.float32, -lim, lim))

    def conv(k, out_c, in_c, ksz):
        kw, kb = jax.random.split(k)
        lim = 1.0 / jnp.sqrt(jnp.float32(in_c * ksz))
        return (jax.random.uniform(kw, (out_c, in_c, ksz), jnp.float32, -lim, lim),
                jax.random.uniform(kb, (out_c,), jnp.float32, -lim, lim))

    p = {}
    p['att_w'], p['att_b'] = lin(ks[0], 1, input_dim)
    p['conv1_w'], p['conv1_b'] = conv(ks[1], H, input_dim, 3)
    p['conv2_w'], p['conv2_b'] = conv(ks[2], H, input_dim, 5)
    p['ln_g'] = jnp.ones((C,), jnp.float32)
    p['ln_b'] = jnp.zeros((C,), jnp.float32)
    p['fc1_w'], p['fc1_b'] = lin(ks[3], H, C)
    p['bn1_g'] = jnp.ones((H,), jnp.float32); p['bn1_b'] = jnp.zeros((H,), jnp.float32)
    p['bn1_m'] = jnp.zeros((H,), jnp.float32); p['bn1_v'] = jnp.ones((H,), jnp.float32)
    p['fc2_w'], p['fc2_b'] = lin(ks[4], H2, H)
    p['bn2_g'] = jnp.ones((H2,), jnp.float32); p['bn2_b'] = jnp.zeros((H2,), jnp.float32)
    p['bn2_m'] = jnp.zeros((H2,), jnp.float32); p['bn2_v'] = jnp.ones((H2,), jnp.float32)
    p['res_w'], p['res_b'] = lin(ks[5], H2, C)
    p['out_w'], p['out_b'] = lin(ks[6], n_classes, H2)
    return p


def prepare_params(params, matmul_dtype=jnp.float32):
    """One-time weight prep: transposes, per-tap conv rhs, eval-BN folding, lane-dense output pad.

    Set matmul_dtype=jnp.bfloat16 on v6e/v7x for native-bf16 MXU (f32 accumulation kept).
    """
    D = params['att_w'].shape[1]
    H = params['conv1_w'].shape[0]
    H2 = params['fc2_w'].shape[0]
    C = D + 2 * H
    NC = params['out_w'].shape[0]
    NCpad = ((NC + 127) // 128) * 128                        # lane-dense logits slab

    # Both conv branches as one per-tap rhs (5, D, 2H); kernel-3 taps sit at offsets 1..3.
    w3t = jnp.transpose(params['conv1_w'], (2, 1, 0))        # (3, D, H)
    w5t = jnp.transpose(params['conv2_w'], (2, 1, 0))        # (5, D, H)
    wc = jnp.zeros((5, D, 2 * H), jnp.float32)
    wc = wc.at[1:4, :, :H].set(w3t)
    wc = wc.at[:, :, H:].set(w5t)
    bc = jnp.concatenate([params['conv1_b'], params['conv2_b']]).reshape(1, 2 * H)

    # fc1 with eval-mode BN1 folded in.
    s1 = params['bn1_g'] * jax.lax.rsqrt(params['bn1_v'] + BN_EPS)
    fc1w = params['fc1_w'].T * s1[None, :]
    fc1b = (params['fc1_b'] - params['bn1_m']) * s1 + params['bn1_b']

    # fc2 with eval-mode BN2 folded in; residual Linear kept as a separate (accumulated) dot.
    s2 = params['bn2_g'] * jax.lax.rsqrt(params['bn2_v'] + BN_EPS)
    fc2w = params['fc2_w'].T * s2[None, :]
    fc2b = (params['fc2_b'] - params['bn2_m']) * s2 + params['bn2_b']
    b2r = (params['res_b'] + fc2b).reshape(1, H2)

    outw = jnp.zeros((H2, NCpad), jnp.float32).at[:, :NC].set(params['out_w'].T)
    outb = jnp.zeros((1, NCpad), jnp.float32).at[:, :NC].set(params['out_b'].reshape(1, NC))

    return {
        'att_w': params['att_w'],                            # (1, D); att_b dropped (softmax-invariant)
        'conv_w': wc.astype(matmul_dtype),                   # (5, D, 2H) per-tap rhs
        'conv_b': bc,
        'ln_g': params['ln_g'].reshape(1, C),
        'ln_b': params['ln_b'].reshape(1, C),
        'fc1_w': fc1w.astype(matmul_dtype),                  # (C, H) BN1-folded
        'fc1_b': fc1b.reshape(1, H),
        'res_w': params['res_w'].T.astype(matmul_dtype),     # (C, H2)
        'fc2_w': fc2w.astype(matmul_dtype),                  # (H, H2) BN2-folded
        'b2r': b2r,
        'out_w': outw.astype(matmul_dtype),                  # (H2, NCpad) lane-dense
        'out_b': outb,                                       # (1, NCpad)
        'n_classes': NC,                                     # python int (do not jit over prep)
    }


# --------------------------- tiling / VMEM sizing ---------------------------- #

def _mxu_row_target():
    """MXU row fill target: 128 on v5e and older, 256 on v6e/v7x."""
    try:
        kind = jax.devices()[0].device_kind.lower()
    except Exception:
        return 256
    return 128 if any(t in kind for t in ("v2", "v3", "v4", "v5")) else 256


def _choose_bt(B, S, D, twoH):
    """Batch tile: as large as the MXU row target / VMEM budget allows."""
    # f32 bytes resident per batch row per grid step: double-buffered token block + mask,
    # padded slab scratch, conv accumulator/relu, head intermediates, padded output.
    bytes_per_row = 4 * (2 * S * D + 2 * S + (S + 4) * D + 3 * S * twoH
                         + 8 * (D + twoH) + 2 * 128)
    budget = 26 * 1024 * 1024                                # headroom for v7x's 64 MiB VMEM
    bt = min(B, _mxu_row_target(), max(1, budget // bytes_per_row))
    if bt >= 8:
        bt -= bt % 8                                         # sublane-aligned tiles
    return max(1, bt)


def _vmem_limit_bytes(Bt, S, D, twoH, weight_args):
    per_step = 4 * (2 * Bt * S * D + 2 * Bt * S + Bt * (S + 4) * D
                    + 3 * Bt * S * twoH + 8 * Bt * (D + twoH) + 2 * Bt * 128)
    wbytes = 2 * sum(int(a.size) * a.dtype.itemsize for a in weight_args)
    est = per_step + wbytes
    return int(min(48 * 1024 * 1024, max(24 * 1024 * 1024, 2 * est)))


# ------------------------------ JAX wrapper ---------------------------------- #

def classificador_forward(prep, x, all_tokens=None, attention_mask=None, batch_tile=None):
    """Mirrors ClassificadorNoticiasAvancado.forward (use_attention=True, eval mode)."""
    NC = prep['n_classes']
    NCpad = prep['out_w'].shape[1]

    head_weights = (prep['ln_g'], prep['ln_b'], prep['fc1_w'], prep['fc1_b'],
                    prep['res_w'], prep['fc2_w'], prep['b2r'],
                    prep['out_w'], prep['out_b'])

    if all_tokens is not None:
        B, S, D = all_tokens.shape
        twoH = prep['conv_b'].shape[-1]
        mask = (jnp.ones((B, S), jnp.float32) if attention_mask is None
                else attention_mask.astype(jnp.float32))

        Bt = int(batch_tile) if batch_tile is not None else _choose_bt(B, S, D, twoH)
        num_tiles = -(-B // Bt)                              # cdiv
        Bp = num_tiles * Bt

        tok = all_tokens.astype(jnp.float32)
        if Bp != B:                                          # pad batch; padded rows sliced off below
            tok = jnp.zeros((Bp, S, D), jnp.float32).at[:B].set(tok)
            mask = jnp.zeros((Bp, S), jnp.float32).at[:B].set(mask)

        weight_args = (prep['att_w'], prep['conv_w'], prep['conv_b']) + head_weights

        def rep(arr):                                        # replicated (grid-invariant) operand
            n = arr.ndim
            return pl.BlockSpec(arr.shape, lambda b, n=n: (0,) * n)

        in_specs = ([pl.BlockSpec((Bt, S, D), lambda b: (b, 0, 0)),
                     pl.BlockSpec((Bt, S), lambda b: (b, 0))]
                    + [rep(a) for a in weight_args])

        out = pl.pallas_call(
            _fused_kernel,
            out_shape=jax.ShapeDtypeStruct((Bp, NCpad), jnp.float32),
            grid=(num_tiles,),
            in_specs=in_specs,
            out_specs=pl.BlockSpec((Bt, NCpad), lambda b: (b, 0)),
            scratch_shapes=[pltpu.VMEM((Bt, S + 4, D), jnp.float32)],
            compiler_params=pltpu.CompilerParams(
                dimension_semantics=("parallel",),
                vmem_limit_bytes=_vmem_limit_bytes(Bt, S, D, twoH, weight_args)),
        )(tok, mask, *weight_args)
        return out[:B, :NC]

    # Module's else-branch: combined = x  (x must already be (B, comb_dim)).
    combined = x.astype(jnp.float32)
    B = combined.shape[0]
    vmem = pl.BlockSpec(memory_space=pltpu.MemorySpace.VMEM)
    out = pl.pallas_call(
        _head_kernel,
        out_shape=jax.ShapeDtypeStruct((B, NCpad), jnp.float32),
        in_specs=[vmem] * (1 + len(head_weights)),
        out_specs=vmem,
    )(combined, *head_weights)
    return out[:, :NC]


# ----------------------------- pure-JAX reference ----------------------------- #

def reference_head(params, combined):
    mu = combined.mean(-1, keepdims=True)
    var = ((combined - mu) ** 2).mean(-1, keepdims=True)
    cn = (combined - mu) / jnp.sqrt(var + LN_EPS) * params['ln_g'] + params['ln_b']
    h1 = cn @ params['fc1_w'].T + params['fc1_b']
    h1 = (h1 - params['bn1_m']) / jnp.sqrt(params['bn1_v'] + BN_EPS) * params['bn1_g'] + params['bn1_b']
    h1 = jax.nn.relu(h1)
    h2 = h1 @ params['fc2_w'].T + params['fc2_b']
    h2 = (h2 - params['bn2_m']) / jnp.sqrt(params['bn2_v'] + BN_EPS) * params['bn2_g'] + params['bn2_b']
    res = cn @ params['res_w'].T + params['res_b']
    h2 = jax.nn.relu(h2 + res)
    return h2 @ params['out_w'].T + params['out_b']


def reference_forward(params, x, all_tokens, attention_mask):
    tokens = all_tokens
    scores = tokens @ params['att_w'].T + params['att_b']              # (B, S, 1)
    if attention_mask is not None:
        scores = jnp.where(attention_mask[:, :, None] == 0, -1e9, scores)
    w = jax.nn.softmax(scores, axis=1)
    context = jnp.einsum('bsd,bso->bd', tokens, w)

    xt = jnp.transpose(tokens, (0, 2, 1))                              # (B, D, S)

    def conv1d(xi, wgt, b, pad):
        y = jax.lax.conv_general_dilated(
            xi, wgt, window_strides=(1,), padding=[(pad, pad)],
            dimension_numbers=('NCH', 'OIH', 'NCH'))
        return y + b[None, :, None]

    c1 = jax.nn.relu(conv1d(xt, params['conv1_w'], params['conv1_b'], 1))
    c2 = jax.nn.relu(conv1d(xt, params['conv2_w'], params['conv2_b'], 2))
    combined = jnp.concatenate([context, jnp.max(c1, axis=2), jnp.max(c2, axis=2)], axis=1)
    return reference_head(params, combined)


# ------------------------------------ main ------------------------------------ #

if __name__ == "__main__":
    input_dim, hidden_dim, n_classes = 32, 32, 3
    B, S = 2, 8
    C = input_dim + 2 * hidden_dim

    key = jax.random.PRNGKey(0)
    kp, kx, kt, kc, kt2 = jax.random.split(key, 5)
    params = init_params(kp, input_dim, hidden_dim, n_classes)
    prep = prepare_params(params, matmul_dtype=jnp.float32)            # f32 for exact validation

    x = jax.random.normal(kx, (B, input_dim), jnp.float32)             # unused in attention path
    all_tokens = jax.random.normal(kt, (B, S, input_dim), jnp.float32)
    attention_mask = jnp.ones((B, S), jnp.float32).at[1, 6:].set(0.0)

    logits = jax.block_until_ready(classificador_forward(prep, x, all_tokens, attention_mask))
    ref = reference_forward(params, x, all_tokens, attention_mask)
    assert logits.shape == (B, n_classes), logits.shape
    assert jnp.allclose(logits, ref, rtol=1e-4, atol=1e-4), (logits, ref)

    # `all_tokens is None` branch (combined = x of shape (B, comb_dim)).
    x_comb = jax.random.normal(kc, (B, C), jnp.float32)
    logits2 = jax.block_until_ready(classificador_forward(prep, x_comb))
    ref2 = reference_head(params, x_comb)
    assert jnp.allclose(logits2, ref2, rtol=1e-4, atol=1e-4), (logits2, ref2)

    # Multi-tile grid with a batch that is NOT a multiple of the tile (cdiv + padded last block).
    B2 = 20
    tokens2 = jax.random.normal(kt2, (B2, S, input_dim), jnp.float32)
    mask2 = jnp.ones((B2, S), jnp.float32).at[3, 5:].set(0.0).at[11, 1:].set(0.0)
    logits3 = jax.block_until_ready(
        classificador_forward(prep, jnp.zeros((B2, input_dim), jnp.float32),
                              tokens2, mask2, batch_tile=8))
    ref3 = reference_forward(params, None, tokens2, mask2)
    assert logits3.shape == (B2, n_classes), logits3.shape
    assert jnp.allclose(logits3, ref3, rtol=1e-4, atol=1e-4), (logits3, ref3)

    # bf16 MXU-operand path (production default for v6e/v7x; f32 accumulation kept).
    prep_bf16 = prepare_params(params, matmul_dtype=jnp.bfloat16)
    logits4 = jax.block_until_ready(classificador_forward(prep_bf16, x, all_tokens, attention_mask))
    assert logits4.shape == (B, n_classes), logits4.shape
    assert jnp.allclose(logits4, ref, rtol=1e-1, atol=1e-1), (logits4, ref)

    print("KERNEL_OK")
</pallas_src>

<mosaic_0001>
module attributes {stable_mosaic.version = 11 : i64} {
  func.func @_fused_kernel(%arg0: i32, %arg1: memref<2x8x32xf32, #tpu.memory_space<vmem>>, %arg2: memref<2x8xf32, #tpu.memory_space<vmem>>, %arg3: memref<1x32xf32, #tpu.memory_space<vmem>>, %arg4: memref<5x32x64xf32, #tpu.memory_space<vmem>>, %arg5: memref<1x64xf32, #tpu.memory_space<vmem>>, %arg6: memref<1x96xf32, #tpu.memory_space<vmem>>, %arg7: memref<1x96xf32, #tpu.memory_space<vmem>>, %arg8: memref<96x32xf32, #tpu.memory_space<vmem>>, %arg9: memref<1x32xf32, #tpu.memory_space<vmem>>, %arg10: memref<96x16xf32, #tpu.memory_space<vmem>>, %arg11: memref<32x16xf32, #tpu.memory_space<vmem>>, %arg12: memref<1x16xf32, #tpu.memory_space<vmem>>, %arg13: memref<16x128xf32, #tpu.memory_space<vmem>>, %arg14: memref<1x128xf32, #tpu.memory_space<vmem>>, %arg15: memref<2x128xf32, #tpu.memory_space<vmem>>, %arg16: memref<2x12x32xf32, #tpu.memory_space<vmem>>) attributes {dimension_semantics = [#tpu.dimension_semantics<parallel>], iteration_bounds = array<i64: 1>, scalar_prefetch = 0 : i64, scratch_operands = 1 : i64, tpu.core_type = #tpu.core_type<tc>, window_params = [{transform_indices = @transform_0, window_bounds = array<i64: 2, 8, 32>}, {transform_indices = @transform_1, window_bounds = array<i64: 2, 8>}, {pipeline_mode = #tpu.pipeline_mode<synchronous>, transform_indices = @transform_2, window_bounds = array<i64: 1, 32>}, {pipeline_mode = #tpu.pipeline_mode<synchronous>, transform_indices = @transform_3, window_bounds = array<i64: 5, 32, 64>}, {pipeline_mode = #tpu.pipeline_mode<synchronous>, transform_indices = @transform_4, window_bounds = array<i64: 1, 64>}, {pipeline_mode = #tpu.pipeline_mode<synchronous>, transform_indices = @transform_5, window_bounds = array<i64: 1, 96>}, {pipeline_mode = #tpu.pipeline_mode<synchronous>, transform_indices = @transform_6, window_bounds = array<i64: 1, 96>}, {pipeline_mode = #tpu.pipeline_mode<synchronous>, transform_indices = @transform_7, window_bounds = array<i64: 96, 32>}, {pipeline_mode = #tpu.pipeline_mode<synchronous>, transform_indices = @transform_8, window_bounds = array<i64: 1, 32>}, {pipeline_mode = #tpu.pipeline_mode<synchronous>, transform_indices = @transform_9, window_bounds = array<i64: 96, 16>}, {pipeline_mode = #tpu.pipeline_mode<synchronous>, transform_indices = @transform_10, window_bounds = array<i64: 32, 16>}, {pipeline_mode = #tpu.pipeline_mode<synchronous>, transform_indices = @transform_11, window_bounds = array<i64: 1, 16>}, {pipeline_mode = #tpu.pipeline_mode<synchronous>, transform_indices = @transform_12, window_bounds = array<i64: 16, 128>}, {pipeline_mode = #tpu.pipeline_mode<synchronous>, transform_indices = @transform_13, window_bounds = array<i64: 1, 128>}, {transform_indices = @transform_14, window_bounds = array<i64: 2, 128>}]} {
    %c0 = arith.constant 0 : index
    %c0_0 = arith.constant 0 : index
    %c0_1 = arith.constant 0 : index
    %0 = vector.load %arg1[%c0, %c0_0, %c0_1] : memref<2x8x32xf32, #tpu.memory_space<vmem>>, vector<2x8x32xf32>
    %c0_2 = arith.constant 0 : index
    %c0_3 = arith.constant 0 : index
    %1 = vector.load %arg3[%c0_2, %c0_3] : memref<1x32xf32, #tpu.memory_space<vmem>>, vector<1x32xf32>
    %2 = vector.shape_cast %1 : vector<1x32xf32> to vector<1x1x32xf32>
    %3 = vector.broadcast %2 : vector<1x1x32xf32> to vector<2x8x32xf32>
    %4 = arith.mulf %0, %3 : vector<2x8x32xf32>
    %cst = arith.constant dense<0.000000e+00> : vector<2x8xf32>
    %5 = vector.multi_reduction <add>, %4, %cst [2] : vector<2x8x32xf32> to vector<2x8xf32>
    %c0_4 = arith.constant 0 : index
    %c0_5 = arith.constant 0 : index
    %6 = vector.load %arg2[%c0_4, %c0_5] : memref<2x8xf32, #tpu.memory_space<vmem>>, vector<2x8xf32>
    %cst_6 = arith.constant 0.000000e+00 : f32
    %7 = vector.broadcast %cst_6 : f32 to vector<2x8xf32>
    %8 = arith.cmpf oeq, %6, %7 : vector<2x8xf32>
    %cst_7 = arith.constant -1.000000e+09 : f32
    %9 = vector.broadcast %cst_7 : f32 to vector<2x8xf32>
    %10 = arith.select %8, %9, %5 : vector<2x8xi1>, vector<2x8xf32>
    %cst_8 = arith.constant dense<0xFF800000> : vector<2xf32>
    %11 = vector.multi_reduction <maximumf>, %10, %cst_8 [1] : vector<2x8xf32> to vector<2xf32>
    %12 = vector.shape_cast %11 : vector<2xf32> to vector<2x1xf32>
    %13 = vector.broadcast %12 : vector<2x1xf32> to vector<2x8xf32>
    %14 = arith.subf %10, %13 : vector<2x8xf32>
    %15 = math.exp %14 : vector<2x8xf32>
    %cst_9 = arith.constant dense<0.000000e+00> : vector<2xf32>
    %16 = vector.multi_reduction <add>, %15, %cst_9 [1] : vector<2x8xf32> to vector<2xf32>
    %17 = vector.shape_cast %16 : vector<2xf32> to vector<2x1xf32>
    %18 = vector.broadcast %17 : vector<2x1xf32> to vector<2x8xf32>
    %19 = arith.divf %15, %18 : vector<2x8xf32>
    %20 = vector.shape_cast %19 : vector<2x8xf32> to vector<2x8x1xf32>
    %21 = vector.broadcast %20 : vector<2x8x1xf32> to vector<2x8x32xf32>
    %22 = arith.mulf %0, %21 : vector<2x8x32xf32>
    %cst_10 = arith.constant dense<0.000000e+00> : vector<2x32xf32>
    %23 = vector.multi_reduction <add>, %22, %cst_10 [1] : vector<2x8x32xf32> to vector<2x32xf32>
    %cst_11 = arith.constant 0.000000e+00 : f32
    %24 = vector.broadcast %cst_11 : f32 to vector<2x2x32xf32>
    %c0_12 = arith.constant 0 : index
    %c0_13 = arith.constant 0 : index
    %c0_14 = arith.constant 0 : index
    %25 = vector.load %arg16[%c0_12, %c0_13, %c0_14] : memref<2x12x32xf32, #tpu.memory_space<vmem>>, vector<2x2x32xf32>
    tpu.vector_store %arg16[%c0_12, %c0_13, %c0_14], %24 {strides = array<i32>} : memref<2x12x32xf32, #tpu.memory_space<vmem>>, vector<2x2x32xf32>,
    %cst_15 = arith.constant 0.000000e+00 : f32
    %26 = vector.broadcast %cst_15 : f32 to vector<2x2x32xf32>
    %c0_16 = arith.constant 0 : index
    %c10 = arith.constant 10 : index
    %c0_17 = arith.constant 0 : index
    %27 = vector.load %arg16[%c0_16, %c10, %c0_17] : memref<2x12x32xf32, #tpu.memory_space<vmem>>, vector<2x2x32xf32>
    tpu.vector_store %arg16[%c0_16, %c10, %c0_17], %26 {strides = array<i32>} : memref<2x12x32xf32, #tpu.memory_space<vmem>>, vector<2x2x32xf32>,
    %c0_18 = arith.constant 0 : index
    %c2 = arith.constant 2 : index
    %c0_19 = arith.constant 0 : index
    %28 = vector.load %arg16[%c0_18, %c2, %c0_19] : memref<2x12x32xf32, #tpu.memory_space<vmem>>, vector<2x8x32xf32>
    tpu.vector_store %arg16[%c0_18, %c2, %c0_19], %0 {strides = array<i32>} : memref<2x12x32xf32, #tpu.memory_space<vmem>>, vector<2x8x32xf32>,
    %cst_20 = arith.constant 0.000000e+00 : f32
    %29 = vector.broadcast %cst_20 : f32 to vector<16x64xf32>
    %c0_21 = arith.constant 0 : index
    %c0_22 = arith.constant 0 : index
    %c0_23 = arith.constant 0 : index
    %30 = vector.load %arg16[%c0_21, %c0_22, %c0_23] : memref<2x12x32xf32, #tpu.memory_space<vmem>>, vector<2x8x32xf32>
    %31 = vector.shape_cast %30 : vector<2x8x32xf32> to vector<16x32xf32>
    %c0_24 = arith.constant 0 : index
    %c0_25 = arith.constant 0 : index
    %c0_26 = arith.constant 0 : index
    %32 = vector.load %arg4[%c0_24, %c0_25, %c0_26] : memref<5x32x64xf32, #tpu.memory_space<vmem>>, vector<1x32x64xf32>
    %33 = vector.shape_cast %32 : vector<1x32x64xf32> to vector<32x64xf32>
    %cst_27 = arith.constant dense<0.000000e+00> : vector<16x64xf32>
    %34 = tpu.matmul %31, %33, %cst_27 {dimension_numbers = #tpu.dot_dimension_numbers<[1], [0], [0], [1], [0, 0, 1, 1], [], []>} : vector<16x32xf32>, vector<32x64xf32>, vector<16x64xf32> -> vector<16x64xf32>
    %35 = arith.addf %29, %34 : vector<16x64xf32>
    %c0_28 = arith.constant 0 : index
    %c1 = arith.constant 1 : index
    %c0_29 = arith.constant 0 : index
    %36 = vector.load %arg16[%c0_28, %c1, %c0_29] : memref<2x12x32xf32, #tpu.memory_space<vmem>>, vector<2x8x32xf32>
    %37 = vector.shape_cast %36 : vector<2x8x32xf32> to vector<16x32xf32>
    %c1_30 = arith.constant 1 : index
    %c0_31 = arith.constant 0 : index
    %c0_32 = arith.constant 0 : index
    %38 = vector.load %arg4[%c1_30, %c0_31, %c0_32] : memref<5x32x64xf32, #tpu.memory_space<vmem>>, vector<1x32x64xf32>
    %39 = vector.shape_cast %38 : vector<1x32x64xf32> to vector<32x64xf32>
    %cst_33 = arith.constant dense<0.000000e+00> : vector<16x64xf32>
    %40 = tpu.matmul %37, %39, %cst_33 {dimension_numbers = #tpu.dot_dimension_numbers<[1], [0], [0], [1], [0, 0, 1, 1], [], []>} : vector<16x32xf32>, vector<32x64xf32>, vector<16x64xf32> -> vector<16x64xf32>
    %41 = arith.addf %35, %40 : vector<16x64xf32>
    %c0_34 = arith.constant 0 : index
    %c2_35 = arith.constant 2 : index
    %c0_36 = arith.constant 0 : index
    %42 = vector.load %arg16[%c0_34, %c2_35, %c0_36] : memref<2x12x32xf32, #tpu.memory_space<vmem>>, vector<2x8x32xf32>
    %43 = vector.shape_cast %42 : vector<2x8x32xf32> to vector<16x32xf32>
    %c2_37 = arith.constant 2 : index
    %c0_38 = arith.constant 0 : index
    %c0_39 = arith.constant 0 : index
    %44 = vector.load %arg4[%c2_37, %c0_38, %c0_39] : memref<5x32x64xf32, #tpu.memory_space<vmem>>, vector<1x32x64xf32>
    %45 = vector.shape_cast %44 : vector<1x32x64xf32> to vector<32x64xf32>
    %cst_40 = arith.constant dense<0.000000e+00> : vector<16x64xf32>
    %46 = tpu.matmul %43, %45, %cst_40 {dimension_numbers = #tpu.dot_dimension_numbers<[1], [0], [0], [1], [0, 0, 1, 1], [], []>} : vector<16x32xf32>, vector<32x64xf32>, vector<16x64xf32> -> vector<16x64xf32>
    %47 = arith.addf %41, %46 : vector<16x64xf32>
    %c0_41 = arith.constant 0 : index
    %c3 = arith.constant 3 : index
    %c0_42 = arith.constant 0 : index
    %48 = vector.load %arg16[%c0_41, %c3, %c0_42] : memref<2x12x32xf32, #tpu.memory_space<vmem>>, vector<2x8x32xf32>
    %49 = vector.shape_cast %48 : vector<2x8x32xf32> to vector<16x32xf32>
    %c3_43 = arith.constant 3 : index
    %c0_44 = arith.constant 0 : index
    %c0_45 = arith.constant 0 : index
    %50 = vector.load %arg4[%c3_43, %c0_44, %c0_45] : memref<5x32x64xf32, #tpu.memory_space<vmem>>, vector<1x32x64xf32>
    %51 = vector.shape_cast %50 : vector<1x32x64xf32> to vector<32x64xf32>
    %cst_46 = arith.constant dense<0.000000e+00> : vector<16x64xf32>
    %52 = tpu.matmul %49, %51, %cst_46 {dimension_numbers = #tpu.dot_dimension_numbers<[1], [0], [0], [1], [0, 0, 1, 1], [], []>} : vector<16x32xf32>, vector<32x64xf32>, vector<16x64xf32> -> vector<16x64xf32>
    %53 = arith.addf %47, %52 : vector<16x64xf32>
    %c0_47 = arith.constant 0 : index
    %c4 = arith.constant 4 : index
    %c0_48 = arith.constant 0 : index
    %54 = vector.load %arg16[%c0_47, %c4, %c0_48] : memref<2x12x32xf32, #tpu.memory_space<vmem>>, vector<2x8x32xf32>
    %55 = vector.shape_cast %54 : vector<2x8x32xf32> to vector<16x32xf32>
    %c4_49 = arith.constant 4 : index
    %c0_50 = arith.constant 0 : index
    %c0_51 = arith.constant 0 : index
    %56 = vector.load %arg4[%c4_49, %c0_50, %c0_51] : memref<5x32x64xf32, #tpu.memory_space<vmem>>, vector<1x32x64xf32>
    %57 = vector.shape_cast %56 : vector<1x32x64xf32> to vector<32x64xf32>
    %cst_52 = arith.constant dense<0.000000e+00> : vector<16x64xf32>
    %58 = tpu.matmul %55, %57, %cst_52 {dimension_numbers = #tpu.dot_dimension_numbers<[1], [0], [0], [1], [0, 0, 1, 1], [], []>} : vector<16x32xf32>, vector<32x64xf32>, vector<16x64xf32> -> vector<16x64xf32>
    %59 = arith.addf %53, %58 : vector<16x64xf32>
    %c0_53 = arith.constant 0 : index
    %c0_54 = arith.constant 0 : index
    %60 = vector.load %arg5[%c0_53, %c0_54] : memref<1x64xf32, #tpu.memory_space<vmem>>, vector<1x64xf32>
    %61 = vector.broadcast %60 : vector<1x64xf32> to vector<16x64xf32>
    %62 = arith.addf %59, %61 : vector<16x64xf32>
    %cst_55 = arith.constant 0.000000e+00 : f32
    %63 = vector.broadcast %cst_55 : f32 to vector<16x64xf32>
    %64 = arith.maximumf %62, %63 : vector<16x64xf32>
    %65 = vector.shape_cast %64 : vector<16x64xf32> to vector<2x8x64xf32>
    %cst_56 = arith.constant dense<0xFF800000> : vector<2x64xf32>
    %66 = vector.multi_reduction <maximumf>, %65, %cst_56 [1] : vector<2x8x64xf32> to vector<2x64xf32>
    %67 = tpu.concatenate %23, %66 in 1 : vector<2x32xf32>, vector<2x64xf32> -> vector<2x96xf32>
    %c0_57 = arith.constant 0 : index
    %c0_58 = arith.constant 0 : index
    %68 = vector.load %arg6[%c0_57, %c0_58] : memref<1x96xf32, #tpu.memory_space<vmem>>, vector<1x96xf32>
    %c0_59 = arith.constant 0 : index
    %c0_60 = arith.constant 0 : index
    %69 = vector.load %arg7[%c0_59, %c0_60] : memref<1x96xf32, #tpu.memory_space<vmem>>, vector<1x96xf32>
    %c0_61 = arith.constant 0 : index
    %c0_62 = arith.constant 0 : index
    %70 = vector.load %arg8[%c0_61, %c0_62] : memref<96x32xf32, #tpu.memory_space<vmem>>, vector<96x32xf32>
    %c0_63 = arith.constant 0 : index
    %c0_64 = arith.constant 0 : index
    %71 = vector.load %arg9[%c0_63, %c0_64] : memref<1x32xf32, #tpu.memory_space<vmem>>, vector<1x32xf32>
    %c0_65 = arith.constant 0 : index
    %c0_66 = arith.constant 0 : index
    %72 = vector.load %arg10[%c0_65, %c0_66] : memref<96x16xf32, #tpu.memory_space<vmem>>, vector<96x16xf32>
    %c0_67 = arith.constant 0 : index
    %c0_68 = arith.constant 0 : index
    %73 = vector.load %arg11[%c0_67, %c0_68] : memref<32x16xf32, #tpu.memory_space<vmem>>, vector<32x16xf32>
    %c0_69 = arith.constant 0 : index
    %c0_70 = arith.constant 0 : index
    %74 = vector.load %arg12[%c0_69, %c0_70] : memref<1x16xf32, #tpu.memory_space<vmem>>, vector<1x16xf32>
    %c0_71 = arith.constant 0 : index
    %c0_72 = arith.constant 0 : index
    %75 = vector.load %arg13[%c0_71, %c0_72] : memref<16x128xf32, #tpu.memory_space<vmem>>, vector<16x128xf32>
    %c0_73 = arith.constant 0 : index
    %c0_74 = arith.constant 0 : index
    %76 = vector.load %arg14[%c0_73, %c0_74] : memref<1x128xf32, #tpu.memory_space<vmem>>, vector<1x128xf32>
    %cst_75 = arith.constant dense<0.000000e+00> : vector<2xf32>
    %77 = vector.multi_reduction <add>, %67, %cst_75 [1] : vector<2x96xf32> to vector<2xf32>
    %78 = vector.shape_cast %77 : vector<2xf32> to vector<2x1xf32>
    %cst_76 = arith.constant 9.600000e+01 : f32
    %79 = vector.broadcast %cst_76 : f32 to vector<2x1xf32>
    %80 = arith.divf %78, %79 : vector<2x1xf32>
    %81 = vector.broadcast %80 : vector<2x1xf32> to vector<2x96xf32>
    %82 = arith.subf %67, %81 : vector<2x96xf32>
    %83 = arith.mulf %82, %82 : vector<2x96xf32>
    %cst_77 = arith.constant dense<0.000000e+00> : vector<2xf32>
    %84 = vector.multi_reduction <add>, %83, %cst_77 [1] : vector<2x96xf32> to vector<2xf32>
    %85 = vector.shape_cast %84 : vector<2xf32> to vector<2x1xf32>
    %cst_78 = arith.constant 9.600000e+01 : f32
    %86 = vector.broadcast %cst_78 : f32 to vector<2x1xf32>
    %87 = arith.divf %85, %86 : vector<2x1xf32>
    %88 = vector.broadcast %80 : vector<2x1xf32> to vector<2x96xf32>
    %89 = arith.subf %67, %88 : vector<2x96xf32>
    %cst_79 = arith.constant 9.99999974E-6 : f32
    %90 = vector.broadcast %cst_79 : f32 to vector<2x1xf32>
    %91 = arith.addf %87, %90 : vector<2x1xf32>
    %92 = math.rsqrt %91 : vector<2x1xf32>
    %93 = vector.broadcast %92 : vector<2x1xf32> to vector<2x96xf32>
    %94 = arith.mulf %89, %93 : vector<2x96xf32>
    %95 = vector.broadcast %68 : vector<1x96xf32> to vector<2x96xf32>
    %96 = arith.mulf %94, %95 : vector<2x96xf32>
    %97 = vector.broadcast %69 : vector<1x96xf32> to vector<2x96xf32>
    %98 = arith.addf %96, %97 : vector<2x96xf32>
    %cst_80 = arith.constant dense<0.000000e+00> : vector<2x32xf32>
    %99 = tpu.matmul %98, %70, %cst_80 {dimension_numbers = #tpu.dot_dimension_numbers<[1], [0], [0], [1], [0, 0, 1, 1], [], []>} : vector<2x96xf32>, vector<96x32xf32>, vector<2x32xf32> -> vector<2x32xf32>
    %100 = vector.broadcast %71 : vector<1x32xf32> to vector<2x32xf32>
    %101 = arith.addf %99, %100 : vector<2x32xf32>
    %cst_81 = arith.constant 0.000000e+00 : f32
    %102 = vector.broadcast %cst_81 : f32 to vector<2x32xf32>
    %103 = arith.maximumf %101, %102 : vector<2x32xf32>
    %cst_82 = arith.constant dense<0.000000e+00> : vector<2x16xf32>
    %104 = tpu.matmul %98, %72, %cst_82 {dimension_numbers = #tpu.dot_dimension_numbers<[1], [0], [0], [1], [0, 0, 1, 1], [], []>} : vector<2x96xf32>, vector<96x16xf32>, vector<2x16xf32> -> vector<2x16xf32>
    %cst_83 = arith.constant dense<0.000000e+00> : vector<2x16xf32>
    %105 = tpu.matmul %103, %73, %cst_83 {dimension_numbers = #tpu.dot_dimension_numbers<[1], [0], [0], [1], [0, 0, 1, 1], [], []>} : vector<2x32xf32>, vector<32x16xf32>, vector<2x16xf32> -> vector<2x16xf32>
    %106 = arith.addf %104, %105 : vector<2x16xf32>
    %107 = vector.broadcast %74 : vector<1x16xf32> to vector<2x16xf32>
    %108 = arith.addf %106, %107 : vector<2x16xf32>
    %cst_84 = arith.constant 0.000000e+00 : f32
    %109 = vector.broadcast %cst_84 : f32 to vector<2x16xf32>
    %110 = arith.maximumf %108, %109 : vector<2x16xf32>
    %cst_85 = arith.constant dense<0.000000e+00> : vector<2x128xf32>
    %111 = tpu.matmul %110, %75, %cst_85 {dimension_numbers = #tpu.dot_dimension_numbers<[1], [0], [0], [1], [0, 0, 1, 1], [], []>} : vector<2x16xf32>, vector<16x128xf32>, vector<2x128xf32> -> vector<2x128xf32>
    %112 = vector.broadcast %76 : vector<1x128xf32> to vector<2x128xf32>
    %113 = arith.addf %111, %112 : vector<2x128xf32>
    %c0_86 = arith.constant 0 : index
    %c0_87 = arith.constant 0 : index
    %114 = vector.load %arg15[%c0_86, %c0_87] : memref<2x128xf32, #tpu.memory_space<vmem>>, vector<2x128xf32>
    tpu.vector_store %arg15[%c0_86, %c0_87], %113 {strides = array<i32>} : memref<2x128xf32, #tpu.memory_space<vmem>>, vector<2x128xf32>,
    return
  }
  func.func @transform_0(%arg0: i32) -> (i32, i32, i32) {
    %c0_i32 = arith.constant 0 : i32
    %c0_i32_0 = arith.constant 0 : i32
    %c0_i32_1 = arith.constant 0 : i32
    return %arg0, %c0_i32, %c0_i32_0 : i32, i32, i32
  }
  func.func @transform_1(%arg0: i32) -> (i32, i32) {
    %c0_i32 = arith.constant 0 : i32
    %c0_i32_0 = arith.constant 0 : i32
    return %arg0, %c0_i32 : i32, i32
  }
  func.func @transform_2(%arg0: i32) -> (i32, i32) {
    %c0_i32 = arith.constant 0 : i32
    %c0_i32_0 = arith.constant 0 : i32
    %c0_i32_1 = arith.constant 0 : i32
    return %c0_i32, %c0_i32_0 : i32, i32
  }
  func.func @transform_3(%arg0: i32) -> (i32, i32, i32) {
    %c0_i32 = arith.constant 0 : i32
    %c0_i32_0 = arith.constant 0 : i32
    %c0_i32_1 = arith.constant 0 : i32
    %c0_i32_2 = arith.constant 0 : i32
    return %c0_i32, %c0_i32_0, %c0_i32_1 : i32, i32, i32
  }
  func.func @transform_4(%arg0: i32) -> (i32, i32) {
    %c0_i32 = arith.constant 0 : i32
    %c0_i32_0 = arith.constant 0 : i32
    %c0_i32_1 = arith.constant 0 : i32
    return %c0_i32, %c0_i32_0 : i32, i32
  }
  func.func @transform_5(%arg0: i32) -> (i32, i32) {
    %c0_i32 = arith.constant 0 : i32
    %c0_i32_0 = arith.constant 0 : i32
    %c0_i32_1 = arith.constant 0 : i32
    return %c0_i32, %c0_i32_0 : i32, i32
  }
  func.func @transform_6(%arg0: i32) -> (i32, i32) {
    %c0_i32 = arith.constant 0 : i32
    %c0_i32_0 = arith.constant 0 : i32
    %c0_i32_1 = arith.constant 0 : i32
    return %c0_i32, %c0_i32_0 : i32, i32
  }
  func.func @transform_7(%arg0: i32) -> (i32, i32) {
    %c0_i32 = arith.constant 0 : i32
    %c0_i32_0 = arith.constant 0 : i32
    %c0_i32_1 = arith.constant 0 : i32
    return %c0_i32, %c0_i32_0 : i32, i32
  }
  func.func @transform_8(%arg0: i32) -> (i32, i32) {
    %c0_i32 = arith.constant 0 : i32
    %c0_i32_0 = arith.constant 0 : i32
    %c0_i32_1 = arith.constant 0 : i32
    return %c0_i32, %c0_i32_0 : i32, i32
  }
  func.func @transform_9(%arg0: i32) -> (i32, i32) {
    %c0_i32 = arith.constant 0 : i32
    %c0_i32_0 = arith.constant 0 : i32
    %c0_i32_1 = arith.constant 0 : i32
    return %c0_i32, %c0_i32_0 : i32, i32
  }
  func.func @transform_10(%arg0: i32) -> (i32, i32) {
    %c0_i32 = arith.constant 0 : i32
    %c0_i32_0 = arith.constant 0 : i32
    %c0_i32_1 = arith.constant 0 : i32
    return %c0_i32, %c0_i32_0 : i32, i32
  }
  func.func @transform_11(%arg0: i32) -> (i32, i32) {
    %c0_i32 = arith.constant 0 : i32
    %c0_i32_0 = arith.constant 0 : i32
    %c0_i32_1 = arith.constant 0 : i32
    return %c0_i32, %c0_i32_0 : i32, i32
  }
  func.func @transform_12(%arg0: i32) -> (i32, i32) {
    %c0_i32 = arith.constant 0 : i32
    %c0_i32_0 = arith.constant 0 : i32
    %c0_i32_1 = arith.constant 0 : i32
    return %c0_i32, %c0_i32_0 : i32, i32
  }
  func.func @transform_13(%arg0: i32) -> (i32, i32) {
    %c0_i32 = arith.constant 0 : i32
    %c0_i32_0 = arith.constant 0 : i32
    %c0_i32_1 = arith.constant 0 : i32
    return %c0_i32, %c0_i32_0 : i32, i32
  }
  func.func @transform_14(%arg0: i32) -> (i32, i32) {
    %c0_i32 = arith.constant 0 : i32
    %c0_i32_0 = arith.constant 0 : i32
    return %arg0, %c0_i32 : i32, i32
  }
}

</mosaic_0001>

<llo_original>
// kernel: tpu_custom_call.1
$region0: #{tpu_custom_call.1}
  #allocation0 [shape = 'u32[]', space=smem, size = 0x4, offset = 0x4, fixed_abs, tag = 'smem constant byte address 0x4 - core index']
  #allocation1 [shape = 'u32[144,128]{1,0:T(1,128)}', space=vmem, size = 0x12000, scoped, tag = 'internal scratch']
  #allocation2 [shape = 'f32[2,12,32]{2,1,0:T(8,128)}', space=vmem, size = 0x4000, scoped, tag = 'scratch operand']
  %s0 = inlined_call_operand.vmem [shape: f32[2,8,32], index: 0, kind: input, shape index: {}]
  %s1 = inlined_call_operand.vmem [shape: f32[2,8], index: 1, kind: input, shape index: {}]
  %s2 = inlined_call_operand.vmem [shape: f32[1,32], index: 2, kind: input, shape index: {}]
  %s3 = inlined_call_operand.vmem [shape: f32[5,32,64], index: 3, kind: input, shape index: {}]
  %s4 = inlined_call_operand.vmem [shape: f32[1,64], index: 4, kind: input, shape index: {}]
  %s5 = inlined_call_operand.vmem [shape: f32[1,96], index: 5, kind: input, shape index: {}]
  %s6 = inlined_call_operand.vmem [shape: f32[1,96], index: 6, kind: input, shape index: {}]
  %s7 = inlined_call_operand.vmem [shape: f32[96,32], index: 7, kind: input, shape index: {}]
  %s8 = inlined_call_operand.vmem [shape: f32[1,32], index: 8, kind: input, shape index: {}]
  %s9 = inlined_call_operand.vmem [shape: f32[96,16], index: 9, kind: input, shape index: {}]
  %s10 = inlined_call_operand.vmem [shape: f32[32,16], index: 10, kind: input, shape index: {}]
  %s11 = inlined_call_operand.vmem [shape: f32[1,16], index: 11, kind: input, shape index: {}]
  %s12 = inlined_call_operand.vmem [shape: f32[16,128], index: 12, kind: input, shape index: {}]
  %s13 = inlined_call_operand.vmem [shape: f32[1,128], index: 13, kind: input, shape index: {}]
  %s14 = inlined_call_operand.hbm [shape: f32[2,128], index: 14, kind: output, shape index: {}]
  %s15 = sld [smem:[#allocation0]]
  $region66: #{tpu_custom_call.1} parent=0
    _
  %s17 = ssub.s32 1, %s15
  %s18 = scalar_select 0, %s17, %s15
  $region1: #{tpu_custom_call.1} parent=0
    #allocation3 [shape = 'u8[1024]{0}', space=vmem, size = 0x400, scoped, tag = 'output window, operand 0, single buffered']
    #allocation4 [shape = 's32[1]{0}', space=sflag, size = 0x4, scoped, tag = 'scoped memory for tpu_custom_call.1']
    %19 = vsyncpa [#allocation4], 0
    // Predicated region
    $region2: #{tpu_custom_call.1} parent=1 // pred_check
      _
    $region3: #{tpu_custom_call.1} parent=1 // pred_check_branch
      %21 = sbr.rel (0) target = $region5
    $region4: #{tpu_custom_call.1} parent=1 // pred_region
      _
    $region5: #{tpu_custom_call.1} parent=1 // pred_fallthru
      _
    // Predicated region
    $region6: #{tpu_custom_call.1} parent=1 // pred_check
      _
    $region7: #{tpu_custom_call.1} parent=1 // pred_check_branch
      %23 = sbr.rel (0) target = $region9
    $region8: #{tpu_custom_call.1} parent=1 // pred_region
      _
    $region9: #{tpu_custom_call.1} parent=1 // pred_fallthru
      _
    // Predicated region
    $region10: #{tpu_custom_call.1} parent=1 // pred_check
      _
    $region11: #{tpu_custom_call.1} parent=1 // pred_check_branch
      %25 = sbr.rel (0) target = $region13
    $region12: #{tpu_custom_call.1} parent=1 // pred_region
      _
    $region13: #{tpu_custom_call.1} parent=1 // pred_fallthru
      _
    // Predicated region
    $region14: #{tpu_custom_call.1} parent=1 // pred_check
      _
    $region15: #{tpu_custom_call.1} parent=1 // pred_check_branch
      %27 = sbr.rel (0) target = $region17
    $region16: #{tpu_custom_call.1} parent=1 // pred_region
      _
    $region17: #{tpu_custom_call.1} parent=1 // pred_fallthru
      _
    // Predicated region
    $region18: #{tpu_custom_call.1} parent=1 // pred_check
      _
    $region19: #{tpu_custom_call.1} parent=1 // pred_check_branch
      %29 = sbr.rel (0) target = $region21
    $region20: #{tpu_custom_call.1} parent=1 // pred_region
      _
    $region21: #{tpu_custom_call.1} parent=1 // pred_fallthru
      _
    // Predicated region
    $region22: #{tpu_custom_call.1} parent=1 // pred_check
      _
    $region23: #{tpu_custom_call.1} parent=1 // pred_check_branch
      %31 = sbr.rel (0) target = $region25
    $region24: #{tpu_custom_call.1} parent=1 // pred_region
      _
    $region25: #{tpu_custom_call.1} parent=1 // pred_fallthru
      _
    // Predicated region
    $region26: #{tpu_custom_call.1} parent=1 // pred_check
      _
    $region27: #{tpu_custom_call.1} parent=1 // pred_check_branch
      %33 = sbr.rel (0) target = $region29
    $region28: #{tpu_custom_call.1} parent=1 // pred_region
      _
    $region29: #{tpu_custom_call.1} parent=1 // pred_fallthru
      _
    // Predicated region
    $region30: #{tpu_custom_call.1} parent=1 // pred_check
      _
    $region31: #{tpu_custom_call.1} parent=1 // pred_check_branch
      %35 = sbr.rel (0) target = $region33
    $region32: #{tpu_custom_call.1} parent=1 // pred_region
      _
    $region33: #{tpu_custom_call.1} parent=1 // pred_fallthru
      _
    // Predicated region
    $region34: #{tpu_custom_call.1} parent=1 // pred_check
      _
    $region35: #{tpu_custom_call.1} parent=1 // pred_check_branch
      %37 = sbr.rel (0) target = $region37
    $region36: #{tpu_custom_call.1} parent=1 // pred_region
      _
    $region37: #{tpu_custom_call.1} parent=1 // pred_fallthru
      _
    // Predicated region
    $region38: #{tpu_custom_call.1} parent=1 // pred_check
      _
    $region39: #{tpu_custom_call.1} parent=1 // pred_check_branch
      %39 = sbr.rel (0) target = $region41
    $region40: #{tpu_custom_call.1} parent=1 // pred_region
      _
    $region41: #{tpu_custom_call.1} parent=1 // pred_fallthru
      _
    // Predicated region
    $region42: #{tpu_custom_call.1} parent=1 // pred_check
      _
    $region43: #{tpu_custom_call.1} parent=1 // pred_check_branch
      %41 = sbr.rel (0) target = $region45
    $region44: #{tpu_custom_call.1} parent=1 // pred_region
      _
    $region45: #{tpu_custom_call.1} parent=1 // pred_fallthru
      _
    // Predicated region
    $region46: #{tpu_custom_call.1} parent=1 // pred_check
      _
    $region47: #{tpu_custom_call.1} parent=1 // pred_check_branch
      %43 = sbr.rel (0) target = $region49
    $region48: #{tpu_custom_call.1} parent=1 // pred_region
      _
    $region49: #{tpu_custom_call.1} parent=1 // pred_fallthru
      _
    // Predicated region
    $region50: #{tpu_custom_call.1} parent=1 // pred_check
      _
    $region51: #{tpu_custom_call.1} parent=1 // pred_check_branch
      %45 = sbr.rel (0) target = $region53
    $region52: #{tpu_custom_call.1} parent=1 // pred_region
      _
    $region53: #{tpu_custom_call.1} parent=1 // pred_fallthru
      _
    // Predicated region
    $region54: #{tpu_custom_call.1} parent=1 // pred_check
      _
    $region55: #{tpu_custom_call.1} parent=1 // pred_check_branch
      %47 = sbr.rel (0) target = $region57
    $region56: #{tpu_custom_call.1} parent=1 // pred_region
      _
    $region57: #{tpu_custom_call.1} parent=1 // pred_fallthru
      _
    %v48 = vld [vmem:[%s0] sm:$0xff]
    %v49 = vld [vmem:[%s0 + $0x8] sm:$0xff]
    %v50 = vld [vmem:[%s2] sm:$0x1]
    %v52 = vlaneseq
    %v53 = vshrl.u32 %v52, 7
    %v54 = vsub.s32 0, %v53
    %v55 = vrot.slane %v50, %v54
    %v57 = vmul.f32 %v48, %v55
    %v58 = vmul.f32 %v49, %v55
    %vm59 = vcmask 261120
    %v60 = vsel %vm59, %v57, 0.0
    %61 = vadd.xlane.f32.xlu0 %v60
    %v62 = vpop.xlane.xlu0 %61
    %v63 = vsel %vm59, %v58, 0.0
    %64 = vadd.xlane.f32.xlu0 %v63
    %v65 = vpop.xlane.xlu0 %64
    %v66 = vld [vmem:[%s1] sm:$0x3]
    %vm67 = vcmp.eq.f32.partialorder %v66, 0.0
    %v70 = vlaneseq
    %v71 = vand.u32 %v70, 127
    %v72 = vlaneseq
    %v73 = vshrl.u32 %v72, 7
    %v74 = vsub.s32 %v71, %v73
    %v75 = vrot.slane %v62, %v74
    %v76 = vlaneseq
    %v77 = vshrl.u32 %v76, 7
    %v78 = vsub.s32 %v71, %v77
    %v79 = vrot.slane %v65, %v78
    %vm80 = vcmask 1041409
    %v81 = vsel %vm80, %v79, %v75
    %v83 = vsel %vm67, -1e+09, %v81
    %vm84 = vcmask 58368
    %v85 = vsel %vm84, %v83, -inf
    %86 = vmax.xlane.f32.xlu0 %v85
    %v87 = vpop.xlane.xlu0 %86
    %v88 = vsub.f32 %v83, %v87
    %v89 = vmul.f32 %v88, 1.442695
    %v90 = vpow.pop %v89
    %v91 = vsel %vm84, %v90, 0.0
    %92 = vadd.xlane.f32.xlu0 %v91
    %v93 = vpop.xlane.xlu0 %92
    %v94 = vrcp.pop %v93
    %v95 = vmul.f32 %v90, %v94
    %v96 = vlaneseq
    %v97 = vshrl.u32 %v96, 7
    %v98 = vsub.s32 0, %v97
    %v99 = vrot.slane %v95, %v98
    %101 = vbcast.lane.b32.xlu0 %v99, 256
    %v102 = vpop.permute.xlu0 %101
    %v103 = vlaneseq
    %v104 = vshrl.u32 %v103, 7
    %v105 = vsub.s32 1, %v104
    %v106 = vrot.slane %v95, %v105
    %108 = vbcast.lane.b32.xlu0 %v106, 256
    %v109 = vpop.permute.xlu0 %108
    %v110 = vmul.f32 %v48, %v102
    %v111 = vmul.f32 %v49, %v109
    %v112 = vsel %vm59, %v110, 0.0
    %v113 = vrot.slane %v112, 4
    %v114 = vadd.f32 %v112, %v113
    %v115 = vrot.slane %v114, 2
    %v116 = vadd.f32 %v114, %v115
    %v117 = vrot.slane %v116, 1
    %v118 = vadd.f32 %v116, %v117
    %v119 = vsel %vm59, %v111, 0.0
    %v120 = vrot.slane %v119, 4
    %v121 = vadd.f32 %v119, %v120
    %v122 = vrot.slane %v121, 2
    %v123 = vadd.f32 %v121, %v122
    %v124 = vrot.slane %v123, 1
    %v125 = vadd.f32 %v123, %v124
    %vm126 = vcmask 254976
    %127 = vst.msk [vmem:[#allocation2] sm:$0x3] %vm126, 0.0
    %128 = vst.msk [vmem:[#allocation2 + $0x10] sm:$0x3] %vm126, 0.0
    %129 = vst.msk [vmem:[#allocation2 + $0xa] sm:$0x3] %vm126, 0.0
    %130 = vst.msk [vmem:[#allocation2 + $0x1a] sm:$0x3] %vm126, 0.0
    %131 = vst.msk [vmem:[#allocation2 + $0x2] sm:$0xff] %vm59, %v48
    %132 = vst.msk [vmem:[#allocation2 + $0x12] sm:$0xff] %vm59, %v49
    %v133 = vld [vmem:[#allocation2] sm:$0xff]
    %v134 = vld [vmem:[#allocation2 + $0x10] sm:$0xff]
    %v135 = vld [vmem:[%s3] sm:$0xff]
    %v136 = vld [vmem:[%s3 + $0x8] sm:$0xff]
    %v137 = vld [vmem:[%s3 + $0x10] sm:$0xff]
    %v138 = vld [vmem:[%s3 + $0x18] sm:$0xff]
    %v139 = vld [vmem:[#allocation2 + $0x1] sm:$0xff]
    %v140 = vld [vmem:[#allocation2 + $0x11] sm:$0xff]
    %s141 = scalar_lea.vmem %s3, 32
    %v142 = vld [vmem:[%s141] sm:$0xff]
    %v143 = vld [vmem:[%s141 + $0x8] sm:$0xff]
    %v144 = vld [vmem:[%s141 + $0x10] sm:$0xff]
    %v145 = vld [vmem:[%s141 + $0x18] sm:$0xff]
    %v147 = vsel %vm59, %v139, 0
    %v150 = vsel %vm59, %v140, 0
    %152 = vmatprep.subr.mxu0 0.0
    %153 = vmatpush1.msra.mxu0 0.0
    %154 = vmatprep.subr.mxu0 0.0
    %155 = vmatpush1.msra.mxu0 0.0
    %156 = vmatprep.subr.mxu0 0.0
    %157 = vmatpush1.msra.mxu0 0.0
    %158 = vmatprep.subr.mxu0 0.0
    %159 = vmatpush1.msra.mxu0 0.0
    %160 = vmatprep.subr.mxu0 0.0
    %161 = vmatpush1.msra.mxu0 0.0
    %162 = vmatprep.subr.mxu0 0.0
    %163 = vmatpush1.msra.mxu0 0.0
    %164 = vmatprep.subr.mxu0 0.0
    %165 = vmatpush1.msra.mxu0 0.0
    %166 = vmatprep.subr.mxu0 0.0
    %167 = vmatpush1.msra.mxu0 0.0
    %168 = vmatprep.subr.mxu0 0.0
    %169 = vmatpush1.msra.mxu0 0.0
    %170 = vmatprep.subr.mxu0 0.0
    %171 = vmatpush1.msra.mxu0 0.0
    %172 = vmatprep.subr.mxu0 0.0
    %173 = vmatpush1.msra.mxu0 0.0
    %174 = vmatprep.subr.mxu0 0.0
    %175 = vmatpush1.msra.mxu0 0.0
    %176 = vmatprep.subr.mxu0 0.0
    %177 = vmatpush1.msra.mxu0 %v145
    %178 = vmatprep.subr.mxu0 0.0
    %179 = vmatpush1.msra.mxu0 %v144
    %180 = vmatprep.subr.mxu0 0.0
    %181 = vmatpush1.msra.mxu0 %v143
    %182 = vmatprep.subr.mxu0 0.0
    %183 = vmatpush1.msra.mxu0 %v142
    %184 = vmatprep.subr.mxu0 0.0
    %185 = vmatpush2.msra.mxu0 0.0
    %186 = vmatprep.subr.mxu0 0.0
    %187 = vmatpush2.msra.mxu0 0.0
    %188 = vmatprep.subr.mxu0 0.0
    %189 = vmatpush2.msra.mxu0 0.0
    %190 = vmatprep.subr.mxu0 0.0
    %191 = vmatpush2.msra.mxu0 0.0
    %192 = vmatprep.subr.mxu0 0.0
    %193 = vmatpush2.msra.mxu0 0.0
    %194 = vmatprep.subr.mxu0 0.0
    %195 = vmatpush2.msra.mxu0 0.0
    %196 = vmatprep.subr.mxu0 0.0
    %197 = vmatpush2.msra.mxu0 0.0
    %198 = vmatprep.subr.mxu0 0.0
    %199 = vmatpush2.msra.mxu0 0.0
    %200 = vmatprep.subr.mxu0 0.0
    %201 = vmatpush2.msra.mxu0 0.0
    %202 = vmatprep.subr.mxu0 0.0
    %203 = vmatpush2.msra.mxu0 0.0
    %204 = vmatprep.subr.mxu0 0.0
    %205 = vmatpush2.msra.mxu0 0.0
    %206 = vmatprep.subr.mxu0 0.0
    %207 = vmatpush2.msra.mxu0 0.0
    %208 = vmatprep.subr.mxu0 0.0
    %209 = vmatpush2.msra.mxu0 0.0
    %210 = vmatprep.subr.mxu0 0.0
    %211 = vmatpush2.msra.mxu0 0.0
    %212 = vmatprep.subr.mxu0 0.0
    %213 = vmatpush2.msra.mxu0 0.0
    %214 = vmatprep.subr.mxu0 0.0
    %215 = vmatpush2.msra.mxu0 0.0
    %216 = vmatprep.mubr.f32.mxu0 0.0
    %217 = vmatmul.mubr.f32.gmra.mxu0 %v147
    %v218 = vpop.f32.mrf.mxu0
    %v219 = vadd.f32 0.0, %v218
    %v220 = vpop.f32.mrf.mxu0
    %221 = vmatprep.mubr.f32.mxu0 0.0
    %222 = vmatmul.mubr.f32.gmra.mxu0 %v150
    %v223 = vpop.f32.mrf.mxu0
    %v224 = vadd.f32 0.0, %v223
    %v225 = vpop.f32.mrf.mxu0
    %226 = vdwg.mxu0
    %v228 = vsel %vm59, %v133, 0
    %v231 = vsel %vm59, %v134, 0
    %233 = vmatprep.subr.mxu0 0.0
    %234 = vmatpush1.msra.mxu0 0.0
    %235 = vmatprep.subr.mxu0 0.0
    %236 = vmatpush1.msra.mxu0 0.0
    %237 = vmatprep.subr.mxu0 0.0
    %238 = vmatpush1.msra.mxu0 0.0
    %239 = vmatprep.subr.mxu0 0.0
    %240 = vmatpush1.msra.mxu0 0.0
    %241 = vmatprep.subr.mxu0 0.0
    %242 = vmatpush1.msra.mxu0 0.0
    %243 = vmatprep.subr.mxu0 0.0
    %244 = vmatpush1.msra.mxu0 0.0
    %245 = vmatprep.subr.mxu0 0.0
    %246 = vmatpush1.msra.mxu0 0.0
    %247 = vmatprep.subr.mxu0 0.0
    %248 = vmatpush1.msra.mxu0 0.0
    %249 = vmatprep.subr.mxu0 0.0
    %250 = vmatpush1.msra.mxu0 0.0
    %251 = vmatprep.subr.mxu0 0.0
    %252 = vmatpush1.msra.mxu0 0.0
    %253 = vmatprep.subr.mxu0 0.0
    %254 = vmatpush1.msra.mxu0 0.0
    %255 = vmatprep.subr.mxu0 0.0
    %256 = vmatpush1.msra.mxu0 0.0
    %257 = vmatprep.subr.mxu0 0.0
    %258 = vmatpush1.msra.mxu0 %v138
    %259 = vmatprep.subr.mxu0 0.0
    %260 = vmatpush1.msra.mxu0 %v137
    %261 = vmatprep.subr.mxu0 0.0
    %262 = vmatpush1.msra.mxu0 %v136
    %263 = vmatprep.subr.mxu0 0.0
    %264 = vmatpush1.msra.mxu0 %v135
    %265 = vmatprep.subr.mxu0 0.0
    %266 = vmatpush2.msra.mxu0 0.0
    %267 = vmatprep.subr.mxu0 0.0
    %268 = vmatpush2.msra.mxu0 0.0
    %269 = vmatprep.subr.mxu0 0.0
    %270 = vmatpush2.msra.mxu0 0.0
    %271 = vmatprep.subr.mxu0 0.0
    %272 = vmatpush2.msra.mxu0 0.0
    %273 = vmatprep.subr.mxu0 0.0
    %274 = vmatpush2.msra.mxu0 0.0
    %275 = vmatprep.subr.mxu0 0.0
    %276 = vmatpush2.msra.mxu0 0.0
    %277 = vmatprep.subr.mxu0 0.0
    %278 = vmatpush2.msra.mxu0 0.0
    %279 = vmatprep.subr.mxu0 0.0
    %280 = vmatpush2.msra.mxu0 0.0
    %281 = vmatprep.subr.mxu0 0.0
    %282 = vmatpush2.msra.mxu0 0.0
    %283 = vmatprep.subr.mxu0 0.0
    %284 = vmatpush2.msra.mxu0 0.0
    %285 = vmatprep.subr.mxu0 0.0
    %286 = vmatpush2.msra.mxu0 0.0
    %287 = vmatprep.subr.mxu0 0.0
    %288 = vmatpush2.msra.mxu0 0.0
    %289 = vmatprep.subr.mxu0 0.0
    %290 = vmatpush2.msra.mxu0 0.0
    %291 = vmatprep.subr.mxu0 0.0
    %292 = vmatpush2.msra.mxu0 0.0
    %293 = vmatprep.subr.mxu0 0.0
    %294 = vmatpush2.msra.mxu0 0.0
    %295 = vmatprep.subr.mxu0 0.0
    %296 = vmatpush2.msra.mxu0 0.0
    %297 = vmatprep.mubr.f32.mxu0 0.0
    %298 = vmatmul.mubr.f32.gmra.mxu0 %v228
    %v299 = vpop.f32.mrf.mxu0
    %v300 = vadd.f32 %v219, %v299
    %v301 = vpop.f32.mrf.mxu0
    %302 = vmatprep.mubr.f32.mxu0 0.0
    %303 = vmatmul.mubr.f32.gmra.mxu0 %v231
    %v304 = vpop.f32.mrf.mxu0
    %v305 = vadd.f32 %v224, %v304
    %v306 = vpop.f32.mrf.mxu0
    %307 = vdwg.mxu0
    %v308 = vld [vmem:[#allocation2 + $0x2] sm:$0xff]
    %v309 = vld [vmem:[#allocation2 + $0x12] sm:$0xff]
    %s310 = scalar_lea.vmem %s3, 64
    %v311 = vld [vmem:[%s310] sm:$0xff]
    %v312 = vld [vmem:[%s310 + $0x8] sm:$0xff]
    %v313 = vld [vmem:[%s310 + $0x10] sm:$0xff]
    %v314 = vld [vmem:[%s310 + $0x18] sm:$0xff]
    %v316 = vsel %vm59, %v308, 0
    %v319 = vsel %vm59, %v309, 0
    %321 = vmatprep.subr.mxu0 0.0
    %322 = vmatpush1.msra.mxu0 0.0
    %323 = vmatprep.subr.mxu0 0.0
    %324 = vmatpush1.msra.mxu0 0.0
    %325 = vmatprep.subr.mxu0 0.0
    %326 = vmatpush1.msra.mxu0 0.0
    %327 = vmatprep.subr.mxu0 0.0
    %328 = vmatpush1.msra.mxu0 0.0
    %329 = vmatprep.subr.mxu0 0.0
    %330 = vmatpush1.msra.mxu0 0.0
    %331 = vmatprep.subr.mxu0 0.0
    %332 = vmatpush1.msra.mxu0 0.0
    %333 = vmatprep.subr.mxu0 0.0
    %334 = vmatpush1.msra.mxu0 0.0
    %335 = vmatprep.subr.mxu0 0.0
    %336 = vmatpush1.msra.mxu0 0.0
    %337 = vmatprep.subr.mxu0 0.0
    %338 = vmatpush1.msra.mxu0 0.0
    %339 = vmatprep.subr.mxu0 0.0
    %340 = vmatpush1.msra.mxu0 0.0
    %341 = vmatprep.subr.mxu0 0.0
    %342 = vmatpush1.msra.mxu0 0.0
    %343 = vmatprep.subr.mxu0 0.0
    %344 = vmatpush1.msra.mxu0 0.0
    %345 = vmatprep.subr.mxu0 0.0
    %346 = vmatpush1.msra.mxu0 %v314
    %347 = vmatprep.subr.mxu0 0.0
    %348 = vmatpush1.msra.mxu0 %v313
    %349 = vmatprep.subr.mxu0 0.0
    %350 = vmatpush1.msra.mxu0 %v312
    %351 = vmatprep.subr.mxu0 0.0
    %352 = vmatpush1.msra.mxu0 %v311
    %353 = vmatprep.subr.mxu0 0.0
    %354 = vmatpush2.msra.mxu0 0.0
    %355 = vmatprep.subr.mxu0 0.0
    %356 = vmatpush2.msra.mxu0 0.0
    %357 = vmatprep.subr.mxu0 0.0
    %358 = vmatpush2.msra.mxu0 0.0
    %359 = vmatprep.subr.mxu0 0.0
    %360 = vmatpush2.msra.mxu0 0.0
    %361 = vmatprep.subr.mxu0 0.0
    %362 = vmatpush2.msra.mxu0 0.0
    %363 = vmatprep.subr.mxu0 0.0
    %364 = vmatpush2.msra.mxu0 0.0
    %365 = vmatprep.subr.mxu0 0.0
    %366 = vmatpush2.msra.mxu0 0.0
    %367 = vmatprep.subr.mxu0 0.0
    %368 = vmatpush2.msra.mxu0 0.0
    %369 = vmatprep.subr.mxu0 0.0
    %370 = vmatpush2.msra.mxu0 0.0
    %371 = vmatprep.subr.mxu0 0.0
    %372 = vmatpush2.msra.mxu0 0.0
    %373 = vmatprep.subr.mxu0 0.0
    %374 = vmatpush2.msra.mxu0 0.0
    %375 = vmatprep.subr.mxu0 0.0
    %376 = vmatpush2.msra.mxu0 0.0
    %377 = vmatprep.subr.mxu0 0.0
    %378 = vmatpush2.msra.mxu0 0.0
    %379 = vmatprep.subr.mxu0 0.0
    %380 = vmatpush2.msra.mxu0 0.0
    %381 = vmatprep.subr.mxu0 0.0
    %382 = vmatpush2.msra.mxu0 0.0
    %383 = vmatprep.subr.mxu0 0.0
    %384 = vmatpush2.msra.mxu0 0.0
    %385 = vmatprep.mubr.f32.mxu0 0.0
    %386 = vmatmul.mubr.f32.gmra.mxu0 %v316
    %v387 = vpop.f32.mrf.mxu0
    %v388 = vadd.f32 0.0, %v387
    %v389 = vpop.f32.mrf.mxu0
    %390 = vmatprep.mubr.f32.mxu0 0.0
    %391 = vmatmul.mubr.f32.gmra.mxu0 %v319
    %v392 = vpop.f32.mrf.mxu0
    %v393 = vadd.f32 0.0, %v392
    %v394 = vpop.f32.mrf.mxu0
    %395 = vdwg.mxu0
    %v396 = vadd.f32 %v300, %v388
    %v397 = vadd.f32 %v305, %v393
    %v398 = vld [vmem:[#allocation2 + $0x3] sm:$0xff]
    %v399 = vld [vmem:[#allocation2 + $0x13] sm:$0xff]
    %s400 = scalar_lea.vmem %s3, 96
    %v401 = vld [vmem:[%s400] sm:$0xff]
    %v402 = vld [vmem:[%s400 + $0x8] sm:$0xff]
    %v403 = vld [vmem:[%s400 + $0x10] sm:$0xff]
    %v404 = vld [vmem:[%s400 + $0x18] sm:$0xff]
    %v406 = vsel %vm59, %v398, 0
    %v409 = vsel %vm59, %v399, 0
    %411 = vmatprep.subr.mxu0 0.0
    %412 = vmatpush1.msra.mxu0 0.0
    %413 = vmatprep.subr.mxu0 0.0
    %414 = vmatpush1.msra.mxu0 0.0
    %415 = vmatprep.subr.mxu0 0.0
    %416 = vmatpush1.msra.mxu0 0.0
    %417 = vmatprep.subr.mxu0 0.0
    %418 = vmatpush1.msra.mxu0 0.0
    %419 = vmatprep.subr.mxu0 0.0
    %420 = vmatpush1.msra.mxu0 0.0
    %421 = vmatprep.subr.mxu0 0.0
    %422 = vmatpush1.msra.mxu0 0.0
    %423 = vmatprep.subr.mxu0 0.0
    %424 = vmatpush1.msra.mxu0 0.0
    %425 = vmatprep.subr.mxu0 0.0
    %426 = vmatpush1.msra.mxu0 0.0
    %427 = vmatprep.subr.mxu0 0.0
    %428 = vmatpush1.msra.mxu0 0.0
    %429 = vmatprep.subr.mxu0 0.0
    %430 = vmatpush1.msra.mxu0 0.0
    %431 = vmatprep.subr.mxu0 0.0
    %432 = vmatpush1.msra.mxu0 0.0
    %433 = vmatprep.subr.mxu0 0.0
    %434 = vmatpush1.msra.mxu0 0.0
    %435 = vmatprep.subr.mxu0 0.0
    %436 = vmatpush1.msra.mxu0 %v404
    %437 = vmatprep.subr.mxu0 0.0
    %438 = vmatpush1.msra.mxu0 %v403
    %439 = vmatprep.subr.mxu0 0.0
    %440 = vmatpush1.msra.mxu0 %v402
    %441 = vmatprep.subr.mxu0 0.0
    %442 = vmatpush1.msra.mxu0 %v401
    %443 = vmatprep.subr.mxu0 0.0
    %444 = vmatpush2.msra.mxu0 0.0
    %445 = vmatprep.subr.mxu0 0.0
    %446 = vmatpush2.msra.mxu0 0.0
    %447 = vmatprep.subr.mxu0 0.0
    %448 = vmatpush2.msra.mxu0 0.0
    %449 = vmatprep.subr.mxu0 0.0
    %450 = vmatpush2.msra.mxu0 0.0
    %451 = vmatprep.subr.mxu0 0.0
    %452 = vmatpush2.msra.mxu0 0.0
    %453 = vmatprep.subr.mxu0 0.0
    %454 = vmatpush2.msra.mxu0 0.0
    %455 = vmatprep.subr.mxu0 0.0
    %456 = vmatpush2.msra.mxu0 0.0
    %457 = vmatprep.subr.mxu0 0.0
    %458 = vmatpush2.msra.mxu0 0.0
    %459 = vmatprep.subr.mxu0 0.0
    %460 = vmatpush2.msra.mxu0 0.0
    %461 = vmatprep.subr.mxu0 0.0
    %462 = vmatpush2.msra.mxu0 0.0
    %463 = vmatprep.subr.mxu0 0.0
    %464 = vmatpush2.msra.mxu0 0.0
    %465 = vmatprep.subr.mxu0 0.0
    %466 = vmatpush2.msra.mxu0 0.0
    %467 = vmatprep.subr.mxu0 0.0
    %468 = vmatpush2.msra.mxu0 0.0
    %469 = vmatprep.subr.mxu0 0.0
    %470 = vmatpush2.msra.mxu0 0.0
    %471 = vmatprep.subr.mxu0 0.0
    %472 = vmatpush2.msra.mxu0 0.0
    %473 = vmatprep.subr.mxu0 0.0
    %474 = vmatpush2.msra.mxu0 0.0
    %475 = vmatprep.mubr.f32.mxu0 0.0
    %476 = vmatmul.mubr.f32.gmra.mxu0 %v406
    %v477 = vpop.f32.mrf.mxu0
    %v478 = vadd.f32 0.0, %v477
    %v479 = vpop.f32.mrf.mxu0
    %480 = vmatprep.mubr.f32.mxu0 0.0
    %481 = vmatmul.mubr.f32.gmra.mxu0 %v409
    %v482 = vpop.f32.mrf.mxu0
    %v483 = vadd.f32 0.0, %v482
    %v484 = vpop.f32.mrf.mxu0
    %485 = vdwg.mxu0
    %v486 = vadd.f32 %v396, %v478
    %v487 = vadd.f32 %v397, %v483
    %v488 = vld [vmem:[#allocation2 + $0x4] sm:$0xff]
    %v489 = vld [vmem:[#allocation2 + $0x14] sm:$0xff]
    %s490 = scalar_lea.vmem %s3, 128
    %v491 = vld [vmem:[%s490] sm:$0xff]
    %v492 = vld [vmem:[%s490 + $0x8] sm:$0xff]
    %v493 = vld [vmem:[%s490 + $0x10] sm:$0xff]
    %v494 = vld [vmem:[%s490 + $0x18] sm:$0xff]
    %v496 = vsel %vm59, %v488, 0
    %v499 = vsel %vm59, %v489, 0
    %501 = vmatprep.subr.mxu0 0.0
    %502 = vmatpush1.msra.mxu0 0.0
    %503 = vmatprep.subr.mxu0 0.0
    %504 = vmatpush1.msra.mxu0 0.0
    %505 = vmatprep.subr.mxu0 0.0
    %506 = vmatpush1.msra.mxu0 0.0
    %507 = vmatprep.subr.mxu0 0.0
    %508 = vmatpush1.msra.mxu0 0.0
    %509 = vmatprep.subr.mxu0 0.0
    %510 = vmatpush1.msra.mxu0 0.0
    %511 = vmatprep.subr.mxu0 0.0
    %512 = vmatpush1.msra.mxu0 0.0
    %513 = vmatprep.subr.mxu0 0.0
    %514 = vmatpush1.msra.mxu0 0.0
    %515 = vmatprep.subr.mxu0 0.0
    %516 = vmatpush1.msra.mxu0 0.0
    %517 = vmatprep.subr.mxu0 0.0
    %518 = vmatpush1.msra.mxu0 0.0
    %519 = vmatprep.subr.mxu0 0.0
    %520 = vmatpush1.msra.mxu0 0.0
    %521 = vmatprep.subr.mxu0 0.0
    %522 = vmatpush1.msra.mxu0 0.0
    %523 = vmatprep.subr.mxu0 0.0
    %524 = vmatpush1.msra.mxu0 0.0
    %525 = vmatprep.subr.mxu0 0.0
    %526 = vmatpush1.msra.mxu0 %v494
    %527 = vmatprep.subr.mxu0 0.0
    %528 = vmatpush1.msra.mxu0 %v493
    %529 = vmatprep.subr.mxu0 0.0
    %530 = vmatpush1.msra.mxu0 %v492
    %531 = vmatprep.subr.mxu0 0.0
    %532 = vmatpush1.msra.mxu0 %v491
    %533 = vmatprep.subr.mxu0 0.0
    %534 = vmatpush2.msra.mxu0 0.0
    %535 = vmatprep.subr.mxu0 0.0
    %536 = vmatpush2.msra.mxu0 0.0
    %537 = vmatprep.subr.mxu0 0.0
    %538 = vmatpush2.msra.mxu0 0.0
    %539 = vmatprep.subr.mxu0 0.0
    %540 = vmatpush2.msra.mxu0 0.0
    %541 = vmatprep.subr.mxu0 0.0
    %542 = vmatpush2.msra.mxu0 0.0
    %543 = vmatprep.subr.mxu0 0.0
    %544 = vmatpush2.msra.mxu0 0.0
    %545 = vmatprep.subr.mxu0 0.0
    %546 = vmatpush2.msra.mxu0 0.0
    %547 = vmatprep.subr.mxu0 0.0
    %548 = vmatpush2.msra.mxu0 0.0
    %549 = vmatprep.subr.mxu0 0.0
    %550 = vmatpush2.msra.mxu0 0.0
    %551 = vmatprep.subr.mxu0 0.0
    %552 = vmatpush2.msra.mxu0 0.0
    %553 = vmatprep.subr.mxu0 0.0
    %554 = vmatpush2.msra.mxu0 0.0
    %555 = vmatprep.subr.mxu0 0.0
    %556 = vmatpush2.msra.mxu0 0.0
    %557 = vmatprep.subr.mxu0 0.0
    %558 = vmatpush2.msra.mxu0 0.0
    %559 = vmatprep.subr.mxu0 0.0
    %560 = vmatpush2.msra.mxu0 0.0
    %561 = vmatprep.subr.mxu0 0.0
    %562 = vmatpush2.msra.mxu0 0.0
    %563 = vmatprep.subr.mxu0 0.0
    %564 = vmatpush2.msra.mxu0 0.0
    %565 = vmatprep.mubr.f32.mxu0 0.0
    %566 = vmatmul.mubr.f32.gmra.mxu0 %v496
    %v567 = vpop.f32.mrf.mxu0
    %v568 = vadd.f32 0.0, %v567
    %v569 = vpop.f32.mrf.mxu0
    %570 = vmatprep.mubr.f32.mxu0 0.0
    %571 = vmatmul.mubr.f32.gmra.mxu0 %v499
    %v572 = vpop.f32.mrf.mxu0
    %v573 = vadd.f32 0.0, %v572
    %v574 = vpop.f32.mrf.mxu0
    %575 = vdwg.mxu0
    %v576 = vadd.f32 %v486, %v568
    %v577 = vadd.f32 %v487, %v573
    %v578 = vld [vmem:[%s4] sm:$0x1]
    %v580 = vlaneseq
    %v581 = vshrl.u32 %v580, 7
    %v582 = vsub.s32 0, %v581
    %v583 = vrot.slane %v578, %v582
    %v585 = vadd.f32 %v576, %v583
    %v586 = vadd.f32 %v577, %v583
    %v587 = vmax.f32 %v585, 0.0
    %v588 = vmax.f32 %v586, 0.0
    %vm589 = vcmask 523264
    %v590 = vsel %vm589, %v587, -inf
    %v591 = vrot.slane %v590, 4
    %v592 = vmax.f32 %v590, %v591
    %v593 = vrot.slane %v592, 2
    %v594 = vmax.f32 %v592, %v593
    %v595 = vrot.slane %v594, 1
    %v596 = vmax.f32 %v594, %v595
    %v597 = vsel %vm589, %v588, -inf
    %v598 = vrot.slane %v597, 4
    %v599 = vmax.f32 %v597, %v598
    %v600 = vrot.slane %v599, 2
    %v601 = vmax.f32 %v599, %v600
    %v602 = vrot.slane %v601, 1
    %v603 = vmax.f32 %v601, %v602
    %v606 = vsel %vm80, %v125, %v118
    %v610 = vsel %vm80, %v603, %v596
    %611 = vrot.lane.b32.xlu0 %v610, 32
    %v612 = vpop.permute.xlu0 %611
    %v614 = vsel %vm59, %v606, %v612
    %v615 = vld [vmem:[%s5] sm:$0x1]
    %v616 = vld [vmem:[%s6] sm:$0x1]
    %v617 = vld [vmem:[%s7] sm:$0xff]
    %v618 = vld [vmem:[%s7 + $0x8] sm:$0xff]
    %v619 = vld [vmem:[%s7 + $0x10] sm:$0xff]
    %v620 = vld [vmem:[%s7 + $0x18] sm:$0xff]
    %v621 = vld [vmem:[%s7 + $0x20] sm:$0xff]
    %v622 = vld [vmem:[%s7 + $0x28] sm:$0xff]
    %v623 = vld [vmem:[%s7 + $0x30] sm:$0xff]
    %v624 = vld [vmem:[%s7 + $0x38] sm:$0xff]
    %v625 = vld [vmem:[%s7 + $0x40] sm:$0xff]
    %v626 = vld [vmem:[%s7 + $0x48] sm:$0xff]
    %v627 = vld [vmem:[%s7 + $0x50] sm:$0xff]
    %v628 = vld [vmem:[%s7 + $0x58] sm:$0xff]
    %v629 = vld [vmem:[%s8] sm:$0x1]
    %v630 = vld [vmem:[%s9] sm:$0xff]
    %v631 = vld [vmem:[%s9 + $0x8] sm:$0xff]
    %v632 = vld [vmem:[%s9 + $0x10] sm:$0xff]
    %v633 = vld [vmem:[%s9 + $0x18] sm:$0xff]
    %v634 = vld [vmem:[%s9 + $0x20] sm:$0xff]
    %v635 = vld [vmem:[%s9 + $0x28] sm:$0xff]
    %v636 = vld [vmem:[%s9 + $0x30] sm:$0xff]
    %v637 = vld [vmem:[%s9 + $0x38] sm:$0xff]
    %v638 = vld [vmem:[%s9 + $0x40] sm:$0xff]
    %v639 = vld [vmem:[%s9 + $0x48] sm:$0xff]
    %v640 = vld [vmem:[%s9 + $0x50] sm:$0xff]
    %v641 = vld [vmem:[%s9 + $0x58] sm:$0xff]
    %v642 = vld [vmem:[%s10] sm:$0xff]
    %v643 = vld [vmem:[%s10 + $0x8] sm:$0xff]
    %v644 = vld [vmem:[%s10 + $0x10] sm:$0xff]
    %v645 = vld [vmem:[%s10 + $0x18] sm:$0xff]
    %v646 = vld [vmem:[%s11] sm:$0x1]
    %v647 = vld [vmem:[%s12] sm:$0xff]
    %v648 = vld [vmem:[%s12 + $0x8] sm:$0xff]
    %v649 = vld [vmem:[%s13] sm:$0x1]
    %vm650 = vcmask 779264
    %v651 = vsel %vm650, %v614, 0.0
    %652 = vadd.xlane.f32.xlu0 %v651
    %v653 = vpop.xlane.xlu0 %652
    %v654 = vrcp.pop 96.0
    %v655 = vmul.f32 %v653, %v654
    %v656 = vsub.f32 %v614, %v655
    %v657 = vmul.f32 %v656, %v656
    %v658 = vsel %vm650, %v657, 0.0
    %659 = vadd.xlane.f32.xlu0 %v658
    %v660 = vpop.xlane.xlu0 %659
    %v661 = vmul.f32 %v660, %v654
    %v662 = vadd.f32 %v661, 1e-05
    %v663 = vrsqrt.pop %v662
    %v664 = vmul.f32 %v656, %v663
    %v666 = vlaneseq
    %v667 = vshrl.u32 %v666, 7
    %v668 = vsub.s32 0, %v667
    %v669 = vrot.slane %v615, %v668
    %v671 = vmul.f32 %v664, %v669
    %v673 = vlaneseq
    %v674 = vshrl.u32 %v673, 7
    %v675 = vsub.s32 0, %v674
    %v676 = vrot.slane %v616, %v675
    %v678 = vadd.f32 %v671, %v676
    %v680 = vlaneseq
    %v681 = vshrl.u32 %v680, 7
    %v682 = vsub.s32 0, %v681
    %v683 = vrot.slane %v629, %v682
    %vm685 = vcmask 785408
    %v687 = vsel %vm685, %v678, 0
    %689 = vmatprep.subr.mxu0 0.0
    %690 = vmatpush1.msra.mxu0 0.0
    %691 = vmatprep.subr.mxu0 0.0
    %692 = vmatpush1.msra.mxu0 0.0
    %693 = vmatprep.subr.mxu0 0.0
    %694 = vmatpush1.msra.mxu0 0.0
    %695 = vmatprep.subr.mxu0 0.0
    %696 = vmatpush1.msra.mxu0 0.0
    %697 = vmatprep.subr.mxu0 0.0
    %698 = vmatpush1.msra.mxu0 %v628
    %699 = vmatprep.subr.mxu0 0.0
    %700 = vmatpush1.msra.mxu0 %v627
    %701 = vmatprep.subr.mxu0 0.0
    %702 = vmatpush1.msra.mxu0 %v626
    %703 = vmatprep.subr.mxu0 0.0
    %704 = vmatpush1.msra.mxu0 %v625
    %705 = vmatprep.subr.mxu0 0.0
    %706 = vmatpush1.msra.mxu0 %v624
    %707 = vmatprep.subr.mxu0 0.0
    %708 = vmatpush1.msra.mxu0 %v623
    %709 = vmatprep.subr.mxu0 0.0
    %710 = vmatpush1.msra.mxu0 %v622
    %711 = vmatprep.subr.mxu0 0.0
    %712 = vmatpush1.msra.mxu0 %v621
    %713 = vmatprep.subr.mxu0 0.0
    %714 = vmatpush1.msra.mxu0 %v620
    %715 = vmatprep.subr.mxu0 0.0
    %716 = vmatpush1.msra.mxu0 %v619
    %717 = vmatprep.subr.mxu0 0.0
    %718 = vmatpush1.msra.mxu0 %v618
    %719 = vmatprep.subr.mxu0 0.0
    %720 = vmatpush1.msra.mxu0 %v617
    %721 = vmatprep.subr.mxu0 0.0
    %722 = vmatpush2.msra.mxu0 0.0
    %723 = vmatprep.subr.mxu0 0.0
    %724 = vmatpush2.msra.mxu0 0.0
    %725 = vmatprep.subr.mxu0 0.0
    %726 = vmatpush2.msra.mxu0 0.0
    %727 = vmatprep.subr.mxu0 0.0
    %728 = vmatpush2.msra.mxu0 0.0
    %729 = vmatprep.subr.mxu0 0.0
    %730 = vmatpush2.msra.mxu0 0.0
    %731 = vmatprep.subr.mxu0 0.0
    %732 = vmatpush2.msra.mxu0 0.0
    %733 = vmatprep.subr.mxu0 0.0
    %734 = vmatpush2.msra.mxu0 0.0
    %735 = vmatprep.subr.mxu0 0.0
    %736 = vmatpush2.msra.mxu0 0.0
    %737 = vmatprep.subr.mxu0 0.0
    %738 = vmatpush2.msra.mxu0 0.0
    %739 = vmatprep.subr.mxu0 0.0
    %740 = vmatpush2.msra.mxu0 0.0
    %741 = vmatprep.subr.mxu0 0.0
    %742 = vmatpush2.msra.mxu0 0.0
    %743 = vmatprep.subr.mxu0 0.0
    %744 = vmatpush2.msra.mxu0 0.0
    %745 = vmatprep.subr.mxu0 0.0
    %746 = vmatpush2.msra.mxu0 0.0
    %747 = vmatprep.subr.mxu0 0.0
    %748 = vmatpush2.msra.mxu0 0.0
    %749 = vmatprep.subr.mxu0 0.0
    %750 = vmatpush2.msra.mxu0 0.0
    %751 = vmatprep.subr.mxu0 0.0
    %752 = vmatpush2.msra.mxu0 0.0
    %753 = vmatprep.mubr.f32.mxu0 0.0
    %754 = vmatmul.mubr.f32.gmra.mxu0 %v687
    %v755 = vpop.f32.mrf.mxu0
    %v756 = vadd.f32 %v683, %v755
    %v757 = vpop.f32.mrf.mxu0
    %758 = vdwg.mxu0
    %v759 = vmax.f32 %v756, 0.0
    %v761 = vsel %vm59, %v759, 0
    %763 = vmatprep.subr.mxu0 0.0
    %764 = vmatpush1.msra.mxu0 0.0
    %765 = vmatprep.subr.mxu0 0.0
    %766 = vmatpush1.msra.mxu0 0.0
    %767 = vmatprep.subr.mxu0 0.0
    %768 = vmatpush1.msra.mxu0 0.0
    %769 = vmatprep.subr.mxu0 0.0
    %770 = vmatpush1.msra.mxu0 0.0
    %771 = vmatprep.subr.mxu0 0.0
    %772 = vmatpush1.msra.mxu0 0.0
    %773 = vmatprep.subr.mxu0 0.0
    %774 = vmatpush1.msra.mxu0 0.0
    %775 = vmatprep.subr.mxu0 0.0
    %776 = vmatpush1.msra.mxu0 0.0
    %777 = vmatprep.subr.mxu0 0.0
    %778 = vmatpush1.msra.mxu0 0.0
    %779 = vmatprep.subr.mxu0 0.0
    %780 = vmatpush1.msra.mxu0 0.0
    %781 = vmatprep.subr.mxu0 0.0
    %782 = vmatpush1.msra.mxu0 0.0
    %783 = vmatprep.subr.mxu0 0.0
    %784 = vmatpush1.msra.mxu0 0.0
    %785 = vmatprep.subr.mxu0 0.0
    %786 = vmatpush1.msra.mxu0 0.0
    %787 = vmatprep.subr.mxu0 0.0
    %788 = vmatpush1.msra.mxu0 %v645
    %789 = vmatprep.subr.mxu0 0.0
    %790 = vmatpush1.msra.mxu0 %v644
    %791 = vmatprep.subr.mxu0 0.0
    %792 = vmatpush1.msra.mxu0 %v643
    %793 = vmatprep.subr.mxu0 0.0
    %794 = vmatpush1.msra.mxu0 %v642
    %795 = vmatprep.subr.mxu0 0.0
    %796 = vmatpush2.msra.mxu0 0.0
    %797 = vmatprep.subr.mxu0 0.0
    %798 = vmatpush2.msra.mxu0 0.0
    %799 = vmatprep.subr.mxu0 0.0
    %800 = vmatpush2.msra.mxu0 0.0
    %801 = vmatprep.subr.mxu0 0.0
    %802 = vmatpush2.msra.mxu0 0.0
    %803 = vmatprep.subr.mxu0 0.0
    %804 = vmatpush2.msra.mxu0 0.0
    %805 = vmatprep.subr.mxu0 0.0
    %806 = vmatpush2.msra.mxu0 0.0
    %807 = vmatprep.subr.mxu0 0.0
    %808 = vmatpush2.msra.mxu0 0.0
    %809 = vmatprep.subr.mxu0 0.0
    %810 = vmatpush2.msra.mxu0 0.0
    %811 = vmatprep.subr.mxu0 0.0
    %812 = vmatpush2.msra.mxu0 0.0
    %813 = vmatprep.subr.mxu0 0.0
    %814 = vmatpush2.msra.mxu0 0.0
    %815 = vmatprep.subr.mxu0 0.0
    %816 = vmatpush2.msra.mxu0 0.0
    %817 = vmatprep.subr.mxu0 0.0
    %818 = vmatpush2.msra.mxu0 0.0
    %819 = vmatprep.subr.mxu0 0.0
    %820 = vmatpush2.msra.mxu0 0.0
    %821 = vmatprep.subr.mxu0 0.0
    %822 = vmatpush2.msra.mxu0 0.0
    %823 = vmatprep.subr.mxu0 0.0
    %824 = vmatpush2.msra.mxu0 0.0
    %825 = vmatprep.subr.mxu0 0.0
    %826 = vmatpush2.msra.mxu0 0.0
    %827 = vmatprep.mubr.f32.mxu0 0.0
    %828 = vmatmul.mubr.f32.gmra.mxu0 %v761
    %v829 = vpop.f32.mrf.mxu0
    %v830 = vadd.f32 0.0, %v829
    %v831 = vpop.f32.mrf.mxu0
    %832 = vdwg.mxu0
    %833 = vmatprep.subr.mxu0 0.0
    %834 = vmatpush1.msra.mxu0 0.0
    %835 = vmatprep.subr.mxu0 0.0
    %836 = vmatpush1.msra.mxu0 0.0
    %837 = vmatprep.subr.mxu0 0.0
    %838 = vmatpush1.msra.mxu0 0.0
    %839 = vmatprep.subr.mxu0 0.0
    %840 = vmatpush1.msra.mxu0 0.0
    %841 = vmatprep.subr.mxu0 0.0
    %842 = vmatpush1.msra.mxu0 %v641
    %843 = vmatprep.subr.mxu0 0.0
    %844 = vmatpush1.msra.mxu0 %v640
    %845 = vmatprep.subr.mxu0 0.0
    %846 = vmatpush1.msra.mxu0 %v639
    %847 = vmatprep.subr.mxu0 0.0
    %848 = vmatpush1.msra.mxu0 %v638
    %849 = vmatprep.subr.mxu0 0.0
    %850 = vmatpush1.msra.mxu0 %v637
    %851 = vmatprep.subr.mxu0 0.0
    %852 = vmatpush1.msra.mxu0 %v636
    %853 = vmatprep.subr.mxu0 0.0
    %854 = vmatpush1.msra.mxu0 %v635
    %855 = vmatprep.subr.mxu0 0.0
    %856 = vmatpush1.msra.mxu0 %v634
    %857 = vmatprep.subr.mxu0 0.0
    %858 = vmatpush1.msra.mxu0 %v633
    %859 = vmatprep.subr.mxu0 0.0
    %860 = vmatpush1.msra.mxu0 %v632
    %861 = vmatprep.subr.mxu0 0.0
    %862 = vmatpush1.msra.mxu0 %v631
    %863 = vmatprep.subr.mxu0 0.0
    %864 = vmatpush1.msra.mxu0 %v630
    %865 = vmatprep.subr.mxu0 0.0
    %866 = vmatpush2.msra.mxu0 0.0
    %867 = vmatprep.subr.mxu0 0.0
    %868 = vmatpush2.msra.mxu0 0.0
    %869 = vmatprep.subr.mxu0 0.0
    %870 = vmatpush2.msra.mxu0 0.0
    %871 = vmatprep.subr.mxu0 0.0
    %872 = vmatpush2.msra.mxu0 0.0
    %873 = vmatprep.subr.mxu0 0.0
    %874 = vmatpush2.msra.mxu0 0.0
    %875 = vmatprep.subr.mxu0 0.0
    %876 = vmatpush2.msra.mxu0 0.0
    %877 = vmatprep.subr.mxu0 0.0
    %878 = vmatpush2.msra.mxu0 0.0
    %879 = vmatprep.subr.mxu0 0.0
    %880 = vmatpush2.msra.mxu0 0.0
    %881 = vmatprep.subr.mxu0 0.0
    %882 = vmatpush2.msra.mxu0 0.0
    %883 = vmatprep.subr.mxu0 0.0
    %884 = vmatpush2.msra.mxu0 0.0
    %885 = vmatprep.subr.mxu0 0.0
    %886 = vmatpush2.msra.mxu0 0.0
    %887 = vmatprep.subr.mxu0 0.0
    %888 = vmatpush2.msra.mxu0 0.0
    %889 = vmatprep.subr.mxu0 0.0
    %890 = vmatpush2.msra.mxu0 0.0
    %891 = vmatprep.subr.mxu0 0.0
    %892 = vmatpush2.msra.mxu0 0.0
    %893 = vmatprep.subr.mxu0 0.0
    %894 = vmatpush2.msra.mxu0 0.0
    %895 = vmatprep.subr.mxu0 0.0
    %896 = vmatpush2.msra.mxu0 0.0
    %897 = vmatprep.mubr.f32.mxu0 0.0
    %898 = vmatmul.mubr.f32.gmra.mxu0 %v687
    %v899 = vpop.f32.mrf.mxu0
    %v900 = vadd.f32 %v830, %v899
    %v901 = vpop.f32.mrf.mxu0
    %902 = vdwg.mxu0
    %v904 = vlaneseq
    %v905 = vshrl.u32 %v904, 7
    %v906 = vsub.s32 0, %v905
    %v907 = vrot.slane %v646, %v906
    %v909 = vadd.f32 %v900, %v907
    %v910 = vmax.f32 %v909, 0.0
    %v912 = vlaneseq
    %v913 = vshrl.u32 %v912, 7
    %v914 = vsub.s32 0, %v913
    %v915 = vrot.slane %v649, %v914
    %vm917 = vcmask 130048
    %v919 = vsel %vm917, %v910, 0
    %921 = vmatprep.subr.mxu0 0.0
    %922 = vmatpush1.msra.mxu0 0.0
    %923 = vmatprep.subr.mxu0 0.0
    %924 = vmatpush1.msra.mxu0 0.0
    %925 = vmatprep.subr.mxu0 0.0
    %926 = vmatpush1.msra.mxu0 0.0
    %927 = vmatprep.subr.mxu0 0.0
    %928 = vmatpush1.msra.mxu0 0.0
    %929 = vmatprep.subr.mxu0 0.0
    %930 = vmatpush1.msra.mxu0 0.0
    %931 = vmatprep.subr.mxu0 0.0
    %932 = vmatpush1.msra.mxu0 0.0
    %933 = vmatprep.subr.mxu0 0.0
    %934 = vmatpush1.msra.mxu0 0.0
    %935 = vmatprep.subr.mxu0 0.0
    %936 = vmatpush1.msra.mxu0 0.0
    %937 = vmatprep.subr.mxu0 0.0
    %938 = vmatpush1.msra.mxu0 0.0
    %939 = vmatprep.subr.mxu0 0.0
    %940 = vmatpush1.msra.mxu0 0.0
    %941 = vmatprep.subr.mxu0 0.0
    %942 = vmatpush1.msra.mxu0 0.0
    %943 = vmatprep.subr.mxu0 0.0
    %944 = vmatpush1.msra.mxu0 0.0
    %945 = vmatprep.subr.mxu0 0.0
    %946 = vmatpush1.msra.mxu0 0.0
    %947 = vmatprep.subr.mxu0 0.0
    %948 = vmatpush1.msra.mxu0 0.0
    %949 = vmatprep.subr.mxu0 0.0
    %950 = vmatpush1.msra.mxu0 %v648
    %951 = vmatprep.subr.mxu0 0.0
    %952 = vmatpush1.msra.mxu0 %v647
    %953 = vmatprep.subr.mxu0 0.0
    %954 = vmatpush2.msra.mxu0 0.0
    %955 = vmatprep.subr.mxu0 0.0
    %956 = vmatpush2.msra.mxu0 0.0
    %957 = vmatprep.subr.mxu0 0.0
    %958 = vmatpush2.msra.mxu0 0.0
    %959 = vmatprep.subr.mxu0 0.0
    %960 = vmatpush2.msra.mxu0 0.0
    %961 = vmatprep.subr.mxu0 0.0
    %962 = vmatpush2.msra.mxu0 0.0
    %963 = vmatprep.subr.mxu0 0.0
    %964 = vmatpush2.msra.mxu0 0.0
    %965 = vmatprep.subr.mxu0 0.0
    %966 = vmatpush2.msra.mxu0 0.0
    %967 = vmatprep.subr.mxu0 0.0
    %968 = vmatpush2.msra.mxu0 0.0
    %969 = vmatprep.subr.mxu0 0.0
    %970 = vmatpush2.msra.mxu0 0.0
    %971 = vmatprep.subr.mxu0 0.0
    %972 = vmatpush2.msra.mxu0 0.0
    %973 = vmatprep.subr.mxu0 0.0
    %974 = vmatpush2.msra.mxu0 0.0
    %975 = vmatprep.subr.mxu0 0.0
    %976 = vmatpush2.msra.mxu0 0.0
    %977 = vmatprep.subr.mxu0 0.0
    %978 = vmatpush2.msra.mxu0 0.0
    %979 = vmatprep.subr.mxu0 0.0
    %980 = vmatpush2.msra.mxu0 0.0
    %981 = vmatprep.subr.mxu0 0.0
    %982 = vmatpush2.msra.mxu0 0.0
    %983 = vmatprep.subr.mxu0 0.0
    %984 = vmatpush2.msra.mxu0 0.0
    %985 = vmatprep.mubr.f32.mxu0 0.0
    %986 = vmatmul.mubr.f32.gmra.mxu0 %v919
    %v987 = vpop.f32.mrf.mxu0
    %v988 = vadd.f32 %v915, %v987
    %v989 = vpop.f32.mrf.mxu0
    %990 = vdwg.mxu0
    %991 = vst [vmem:[#allocation3] sm:$0x3] %v988
    // Predicated region
    $region58: #{tpu_custom_call.1} parent=1 // pred_check
      _
    $region59: #{tpu_custom_call.1} parent=1 // pred_check_branch
      %993 = sbr.rel (0) target = $region61
    $region60: #{tpu_custom_call.1} parent=1 // pred_region
      %s995 = ssub.s32 32, 32
      %996 = vsyncadd [#allocation4], %s995
      %s998 = sshll.u32 [#allocation3], 4
      %s999 = int_to_ptr.vmem [resolvable:$true] %s998
      %1001 = dma.vmem_to_hbm [thread:$0]  %s999, 32, %s14, [#allocation4]
    $region61: #{tpu_custom_call.1} parent=1 // pred_fallthru
      _
    // Predicated region
    $region62: #{tpu_custom_call.1} parent=1 // pred_check
      _
    $region63: #{tpu_custom_call.1} parent=1 // pred_check_branch
      %1003 = sbr.rel (0) target = $region65
    $region64: #{tpu_custom_call.1} parent=1 // pred_region
      %1004 = dma.done [#allocation4], 32
    $region65: #{tpu_custom_call.1} parent=1 // pred_fallthru
      _
    %1005 = vsyncpa [#allocation4], 1

</llo_original>
